<compile_context>
chip_gen: v7x
topology: tpu7x:2x2x1
jax: 0.10.0
libtpu: 0.0.40
codegen_flags: <defaults>
</compile_context>

<pallas_src>
import functools
import math

import jax
import jax.numpy as jnp
from jax.experimental import pallas as pl
from jax.experimental.pallas import tpu as pltpu


# ----------------------------------------------------------------------------
# Kernel: one grid step == one block of `block_b` samples.
# ----------------------------------------------------------------------------
def _attention_kernel(x_ref, wqkv_ref, wo_ref, bqkv_ref, bo_ref,
                      out_ref, wts_ref, acc_ref,
                      *, num_heads, head_size, mxu_dtype):
    bb, s, h = x_ref.shape                      # (block_b, S, H)

    # ---- fused QKV projection: one (bb*S, H) @ (H, 3H) MXU matmul ----------
    x2 = x_ref[...].reshape(bb * s, h).astype(mxu_dtype)
    qkv = jnp.dot(x2, wqkv_ref[...].astype(mxu_dtype),
                  preferred_element_type=jnp.float32) + bqkv_ref[...]

    # 1/sqrt(d) is already folded into Wq/bq by the wrapper.
    q = qkv[:, 0 * h:1 * h].reshape(bb, s, h)
    k = qkv[:, 1 * h:2 * h].reshape(bb, s, h)
    v = qkv[:, 2 * h:3 * h].reshape(bb, s, h)

    # ---- per-head attention; O-projection accumulated into VMEM scratch ----
    acc_ref[...] = jnp.zeros_like(acc_ref)
    for hd in range(num_heads):
        lo = hd * head_size
        qh = q[:, :, lo:lo + head_size].astype(mxu_dtype)       # (bb, S, d)
        kh = k[:, :, lo:lo + head_size].astype(mxu_dtype)
        vh = v[:, :, lo:lo + head_size].astype(mxu_dtype)

        sc = jnp.einsum('bqd,bkd->bqk', qh, kh,
                        preferred_element_type=jnp.float32)     # (bb, S, S)
        m = jnp.max(sc, axis=-1, keepdims=True)
        e = jnp.exp(sc - m)
        # Exact division (not pl.reciprocal(approx=True)) to keep probs within
        # the reference tolerance — probs are a returned output here.
        p = e / jnp.sum(e, axis=-1, keepdims=True)

        wts_ref[:, hd] = p.astype(wts_ref.dtype)                # pre-dropout probs

        ctx = jnp.einsum('bqk,bkd->bqd', p.astype(mxu_dtype), vh,
                         preferred_element_type=jnp.float32)    # (bb, S, d)
        wo_h = wo_ref[lo:lo + head_size, :].astype(mxu_dtype)   # (d, H) slab
        acc_ref[...] += jnp.dot(
            ctx.reshape(bb * s, head_size).astype(mxu_dtype), wo_h,
            preferred_element_type=jnp.float32).reshape(bb, s, h)

    out_ref[...] = (acc_ref[...] + bo_ref[...]).astype(out_ref.dtype)


# ----------------------------------------------------------------------------
# Block-size / VMEM planning (probs tile is the dominant term).
# ----------------------------------------------------------------------------
def _plan_blocks(B, S, H, num_heads, probs_bytes, block_b=None):
    try:
        phys_vmem = int(pltpu.get_tpu_info().vmem_capacity_bytes)
    except Exception:
        phys_vmem = 64 * 1024 * 1024            # conservative: v7x has 64 MiB / TC
    budget = int(phys_vmem * 0.55)              # headroom for compiler scratch

    w_bytes = 2 * 4 * (3 * H * H + H * H + 4 * H)     # resident weights (2 buffers)

    def footprint(bb):
        io = 2 * 2 * bb * S * H * 4                   # x + out tiles, double-buffered
        probs = 2 * bb * num_heads * S * S * probs_bytes   # probs tile, double-buffered
        live = bb * S * 4 * H * 4                     # qkv slab + acc scratch
        live += 3 * bb * S * S * 4                    # scores / exp temporaries
        return io + probs + w_bytes + live + (2 << 20)

    if block_b is None:
        block_b = 1
        for bb in range(1, B + 1):
            if B % bb:
                continue
            if B >= 2 and B // bb < 2:
                # Keep >= 2 grid steps so the "parallel" axis can split across
                # v7x's two TensorCores (harmless elsewhere).
                continue
            if footprint(bb) <= budget:
                block_b = max(block_b, bb)

    vmem_limit = int(min(max(32 << 20, footprint(block_b) + (4 << 20)),
                         max(32 << 20, phys_vmem * 3 // 4)))
    return block_b, vmem_limit


# ----------------------------------------------------------------------------
# Wrapper
# ----------------------------------------------------------------------------
def attention_forward(x, wq, bq, wk, bk, wv, bv, wo, bo, *, num_heads,
                      block_b=None, mxu_dtype=jnp.float32,
                      probs_dtype=jnp.float32):
    """x: (B, S, H). Weights (H, H) in (in, out) layout, biases (1, H).

    mxu_dtype=jnp.bfloat16 is the recommended perf path on v5e/v6e/v7x
    (MXU operands in bf16, f32 accumulation and f32 softmax)."""
    B, S, H = x.shape
    assert H % num_heads == 0, "hidden_size must be divisible by num_heads"
    D = H // num_heads
    scale = 1.0 / math.sqrt(D)

    # Fuse Q|K|V into one (H, 3H) weight / (1, 3H) bias, folding 1/sqrt(d) into Q.
    wqkv = jnp.concatenate([wq * scale, wk, wv], axis=1)
    bqkv = jnp.concatenate([bq * scale, bk, bv], axis=1)

    block_b, vmem_limit = _plan_blocks(
        B, S, H, num_heads, jnp.dtype(probs_dtype).itemsize, block_b=block_b)
    assert B % block_b == 0
    grid = (B // block_b,)

    kernel = functools.partial(_attention_kernel, num_heads=num_heads,
                               head_size=D, mxu_dtype=mxu_dtype)

    out_shape = (
        jax.ShapeDtypeStruct((B, S, H), x.dtype),                  # attention_output
        jax.ShapeDtypeStruct((B, num_heads, S, S), probs_dtype),   # attention_probs
    )

    grid_spec = pltpu.PrefetchScalarGridSpec(
        num_scalar_prefetch=0,
        grid=grid,
        in_specs=[
            pl.BlockSpec((block_b, S, H), lambda b: (b, 0, 0)),    # x tile
            pl.BlockSpec((H, 3 * H), lambda b: (0, 0)),            # fused Wqkv (resident)
            pl.BlockSpec((H, H), lambda b: (0, 0)),                # Wo (resident)
            pl.BlockSpec((1, 3 * H), lambda b: (0, 0)),            # fused bqkv
            pl.BlockSpec((1, H), lambda b: (0, 0)),                # bo
        ],
        out_specs=(
            pl.BlockSpec((block_b, S, H), lambda b: (b, 0, 0)),
            pl.BlockSpec((block_b, num_heads, S, S), lambda b: (b, 0, 0, 0)),
        ),
        scratch_shapes=[pltpu.VMEM((block_b, S, H), jnp.float32)],  # O-proj accumulator
    )

    # Advisory cost for XLA's scheduler.
    flops = 2 * B * S * (3 * H * H) + 4 * B * S * S * H + 2 * B * S * H * H
    transcendentals = B * num_heads * S * S
    bytes_accessed = (4 * 2 * B * S * H
                      + jnp.dtype(probs_dtype).itemsize * B * num_heads * S * S
                      + 4 * (4 * H * H + 4 * H))

    return pl.pallas_call(
        kernel,
        out_shape=out_shape,
        grid_spec=grid_spec,
        compiler_params=pltpu.CompilerParams(
            dimension_semantics=("parallel",),      # samples independent -> megacore
            vmem_limit_bytes=vmem_limit,
        ),
        cost_estimate=pl.CostEstimate(
            flops=flops,
            transcendentals=transcendentals,
            bytes_accessed=bytes_accessed,
        ),
    )(x, wqkv, wo, bqkv, bo)


# ----------------------------------------------------------------------------
# Pure-JAX reference (mirrors the PyTorch forward, dropout in eval mode).
# ----------------------------------------------------------------------------
def _reference(x, wq, bq, wk, bk, wv, bv, wo, bo, num_heads):
    B, S, H = x.shape
    D = H // num_heads
    q = x @ wq + bq
    k = x @ wk + bk
    v = x @ wv + bv

    def split(t):  # (B, S, H) -> (B, NH, S, D)  == transpose_for_scores
        return t.reshape(B, S, num_heads, D).transpose(0, 2, 1, 3)

    qh, kh, vh = split(q), split(k), split(v)
    sc = jnp.einsum('bhqd,bhkd->bhqk', qh, kh) / math.sqrt(D)
    p = jax.nn.softmax(sc, axis=-1)
    ctx = jnp.einsum('bhqk,bhkd->bhqd', p, vh)
    ctx = ctx.transpose(0, 2, 1, 3).reshape(B, S, H)
    out = ctx @ wo + bo
    return out, p


if __name__ == "__main__":
    key = jax.random.PRNGKey(0)
    B, S, H, NH = 2, 8, 32, 4
    ks = jax.random.split(key, 9)
    x = jax.random.normal(ks[0], (B, S, H), dtype=jnp.float32)
    sw = 1.0 / math.sqrt(H)
    wq = jax.random.normal(ks[1], (H, H), jnp.float32) * sw
    wk = jax.random.normal(ks[2], (H, H), jnp.float32) * sw
    wv = jax.random.normal(ks[3], (H, H), jnp.float32) * sw
    wo = jax.random.normal(ks[4], (H, H), jnp.float32) * sw
    bq = jax.random.normal(ks[5], (1, H), jnp.float32) * 0.1
    bk = jax.random.normal(ks[6], (1, H), jnp.float32) * 0.1
    bv = jax.random.normal(ks[7], (1, H), jnp.float32) * 0.1
    bo = jax.random.normal(ks[8], (1, H), jnp.float32) * 0.1

    ref_out, ref_wts = _reference(x, wq, bq, wk, bk, wv, bv, wo, bo, NH)

    # f32 path (faithful to the PyTorch module).
    fn = jax.jit(functools.partial(attention_forward, num_heads=NH))
    out, wts = fn(x, wq, bq, wk, bk, wv, bv, wo, bo)
    jax.block_until_ready((out, wts))

    assert out.shape == (B, S, H) and out.dtype == jnp.float32
    assert wts.shape == (B, NH, S, S) and wts.dtype == jnp.float32
    assert jnp.allclose(out, ref_out, atol=1e-4, rtol=1e-4), \
        float(jnp.max(jnp.abs(out - ref_out)))
    assert jnp.allclose(wts, ref_wts, atol=1e-5, rtol=1e-4), \
        float(jnp.max(jnp.abs(wts - ref_wts)))

    # bf16 MXU-operand path (v5e/v6e/v7x perf path) — loose tolerance vs f32 ref.
    fn16 = jax.jit(functools.partial(attention_forward, num_heads=NH,
                                     mxu_dtype=jnp.bfloat16))
    out16, wts16 = fn16(x, wq, bq, wk, bk, wv, bv, wo, bo)
    jax.block_until_ready((out16, wts16))
    assert jnp.allclose(out16, ref_out, atol=7e-2, rtol=7e-2), \
        float(jnp.max(jnp.abs(out16 - ref_out)))
    assert jnp.allclose(wts16, ref_wts, atol=3e-2, rtol=3e-2), \
        float(jnp.max(jnp.abs(wts16 - ref_wts)))

    print("KERNEL_OK")
</pallas_src>

<mosaic_0001>
module attributes {stable_mosaic.version = 11 : i64} {
  func.func @_attention_kernel(%arg0: i32, %arg1: memref<1x8x32xf32, #tpu.memory_space<vmem>>, %arg2: memref<32x96xf32, #tpu.memory_space<vmem>>, %arg3: memref<32x32xf32, #tpu.memory_space<vmem>>, %arg4: memref<1x96xf32, #tpu.memory_space<vmem>>, %arg5: memref<1x32xf32, #tpu.memory_space<vmem>>, %arg6: memref<1x8x32xf32, #tpu.memory_space<vmem>>, %arg7: memref<1x4x8x8xf32, #tpu.memory_space<vmem>>, %arg8: memref<1x8x32xf32, #tpu.memory_space<vmem>>) attributes {dimension_semantics = [#tpu.dimension_semantics<parallel>], iteration_bounds = array<i64: 2>, scalar_prefetch = 0 : i64, scratch_operands = 1 : i64, tpu.core_type = #tpu.core_type<tc>, window_params = [{transform_indices = @transform_0, window_bounds = array<i64: 1, 8, 32>}, {pipeline_mode = #tpu.pipeline_mode<synchronous>, transform_indices = @transform_1, window_bounds = array<i64: 32, 96>}, {pipeline_mode = #tpu.pipeline_mode<synchronous>, transform_indices = @transform_2, window_bounds = array<i64: 32, 32>}, {pipeline_mode = #tpu.pipeline_mode<synchronous>, transform_indices = @transform_3, window_bounds = array<i64: 1, 96>}, {pipeline_mode = #tpu.pipeline_mode<synchronous>, transform_indices = @transform_4, window_bounds = array<i64: 1, 32>}, {transform_indices = @transform_5, window_bounds = array<i64: 1, 8, 32>}, {transform_indices = @transform_6, window_bounds = array<i64: 1, 4, 8, 8>}]} {
    %c0 = arith.constant 0 : index
    %c0_0 = arith.constant 0 : index
    %c0_1 = arith.constant 0 : index
    %0 = vector.load %arg1[%c0, %c0_0, %c0_1] : memref<1x8x32xf32, #tpu.memory_space<vmem>>, vector<1x8x32xf32>
    %1 = vector.shape_cast %0 : vector<1x8x32xf32> to vector<8x32xf32>
    %c0_2 = arith.constant 0 : index
    %c0_3 = arith.constant 0 : index
    %2 = vector.load %arg2[%c0_2, %c0_3] : memref<32x96xf32, #tpu.memory_space<vmem>>, vector<32x96xf32>
    %cst = arith.constant dense<0.000000e+00> : vector<8x96xf32>
    %3 = tpu.matmul %1, %2, %cst {dimension_numbers = #tpu.dot_dimension_numbers<[1], [0], [0], [1], [0, 0, 1, 1], [], []>} : vector<8x32xf32>, vector<32x96xf32>, vector<8x96xf32> -> vector<8x96xf32>
    %c0_4 = arith.constant 0 : index
    %c0_5 = arith.constant 0 : index
    %4 = vector.load %arg4[%c0_4, %c0_5] : memref<1x96xf32, #tpu.memory_space<vmem>>, vector<1x96xf32>
    %5 = vector.broadcast %4 : vector<1x96xf32> to vector<8x96xf32>
    %6 = arith.addf %3, %5 : vector<8x96xf32>
    %7 = vector.extract_strided_slice %6 {offsets = [0, 0], sizes = [8, 32], strides = [1, 1]} : vector<8x96xf32> to vector<8x32xf32>
    %8 = vector.shape_cast %7 : vector<8x32xf32> to vector<1x8x32xf32>
    %9 = vector.extract_strided_slice %6 {offsets = [0, 32], sizes = [8, 32], strides = [1, 1]} : vector<8x96xf32> to vector<8x32xf32>
    %10 = vector.shape_cast %9 : vector<8x32xf32> to vector<1x8x32xf32>
    %11 = vector.extract_strided_slice %6 {offsets = [0, 64], sizes = [8, 32], strides = [1, 1]} : vector<8x96xf32> to vector<8x32xf32>
    %12 = vector.shape_cast %11 : vector<8x32xf32> to vector<1x8x32xf32>
    %cst_6 = arith.constant 0.000000e+00 : f32
    %13 = vector.broadcast %cst_6 : f32 to vector<1x8x32xf32>
    %c0_7 = arith.constant 0 : index
    %c0_8 = arith.constant 0 : index
    %c0_9 = arith.constant 0 : index
    %14 = vector.load %arg8[%c0_7, %c0_8, %c0_9] : memref<1x8x32xf32, #tpu.memory_space<vmem>>, vector<1x8x32xf32>
    tpu.vector_store %arg8[%c0_7, %c0_8, %c0_9], %13 {strides = array<i32>} : memref<1x8x32xf32, #tpu.memory_space<vmem>>, vector<1x8x32xf32>,
    %15 = vector.extract_strided_slice %8 {offsets = [0, 0, 0], sizes = [1, 8, 8], strides = [1, 1, 1]} : vector<1x8x32xf32> to vector<1x8x8xf32>
    %16 = vector.extract_strided_slice %10 {offsets = [0, 0, 0], sizes = [1, 8, 8], strides = [1, 1, 1]} : vector<1x8x32xf32> to vector<1x8x8xf32>
    %17 = vector.extract_strided_slice %12 {offsets = [0, 0, 0], sizes = [1, 8, 8], strides = [1, 1, 1]} : vector<1x8x32xf32> to vector<1x8x8xf32>
    "tpu.trace_start"() <{level = 10 : i32, message = "bqd,bkd->bqk"}> : () -> ()
    %cst_10 = arith.constant dense<0.000000e+00> : vector<1x8x8xf32>
    %18 = tpu.matmul %15, %16, %cst_10 {dimension_numbers = #tpu.dot_dimension_numbers<[2], [2], [1], [1], [0, 0, 0, 1, 1, 1], [0], [0]>} : vector<1x8x8xf32>, vector<1x8x8xf32>, vector<1x8x8xf32> -> vector<1x8x8xf32>
    "tpu.trace_stop"() : () -> ()
    %cst_11 = arith.constant dense<0xFF800000> : vector<1x8xf32>
    %19 = vector.multi_reduction <maximumf>, %18, %cst_11 [2] : vector<1x8x8xf32> to vector<1x8xf32>
    %20 = vector.shape_cast %19 : vector<1x8xf32> to vector<1x8x1xf32>
    %21 = vector.broadcast %20 : vector<1x8x1xf32> to vector<1x8x8xf32>
    %22 = arith.subf %18, %21 : vector<1x8x8xf32>
    %23 = math.exp %22 : vector<1x8x8xf32>
    %cst_12 = arith.constant dense<0.000000e+00> : vector<1x8xf32>
    %24 = vector.multi_reduction <add>, %23, %cst_12 [2] : vector<1x8x8xf32> to vector<1x8xf32>
    %25 = vector.shape_cast %24 : vector<1x8xf32> to vector<1x8x1xf32>
    %26 = vector.broadcast %25 : vector<1x8x1xf32> to vector<1x8x8xf32>
    %27 = arith.divf %23, %26 : vector<1x8x8xf32>
    %c0_13 = arith.constant 0 : index
    %c0_14 = arith.constant 0 : index
    %c0_15 = arith.constant 0 : index
    %c0_16 = arith.constant 0 : index
    %28 = vector.load %arg7[%c0_13, %c0_14, %c0_15, %c0_16] : memref<1x4x8x8xf32, #tpu.memory_space<vmem>>, vector<1x1x8x8xf32>
    %29 = vector.shape_cast %28 : vector<1x1x8x8xf32> to vector<1x8x8xf32>
    %30 = vector.shape_cast %27 : vector<1x8x8xf32> to vector<1x1x8x8xf32>
    tpu.vector_store %arg7[%c0_13, %c0_14, %c0_15, %c0_16], %30 {strides = array<i32>} : memref<1x4x8x8xf32, #tpu.memory_space<vmem>>, vector<1x1x8x8xf32>,
    "tpu.trace_start"() <{level = 10 : i32, message = "bqk,bkd->bqd"}> : () -> ()
    %cst_17 = arith.constant dense<0.000000e+00> : vector<1x8x8xf32>
    %31 = tpu.matmul %27, %17, %cst_17 {dimension_numbers = #tpu.dot_dimension_numbers<[2], [1], [1], [2], [0, 0, 0, 1, 1, 2], [0], [0]>} : vector<1x8x8xf32>, vector<1x8x8xf32>, vector<1x8x8xf32> -> vector<1x8x8xf32>
    "tpu.trace_stop"() : () -> ()
    %c0_18 = arith.constant 0 : index
    %c0_19 = arith.constant 0 : index
    %32 = vector.load %arg3[%c0_18, %c0_19] : memref<32x32xf32, #tpu.memory_space<vmem>>, vector<8x32xf32>
    %c0_20 = arith.constant 0 : index
    %c0_21 = arith.constant 0 : index
    %c0_22 = arith.constant 0 : index
    %33 = vector.load %arg8[%c0_20, %c0_21, %c0_22] : memref<1x8x32xf32, #tpu.memory_space<vmem>>, vector<1x8x32xf32>
    %34 = vector.shape_cast %31 : vector<1x8x8xf32> to vector<8x8xf32>
    %cst_23 = arith.constant dense<0.000000e+00> : vector<8x32xf32>
    %35 = tpu.matmul %34, %32, %cst_23 {dimension_numbers = #tpu.dot_dimension_numbers<[1], [0], [0], [1], [0, 0, 1, 1], [], []>} : vector<8x8xf32>, vector<8x32xf32>, vector<8x32xf32> -> vector<8x32xf32>
    %36 = vector.shape_cast %35 : vector<8x32xf32> to vector<1x8x32xf32>
    %37 = arith.addf %33, %36 : vector<1x8x32xf32>
    %c0_24 = arith.constant 0 : index
    %c0_25 = arith.constant 0 : index
    %c0_26 = arith.constant 0 : index
    %38 = vector.load %arg8[%c0_24, %c0_25, %c0_26] : memref<1x8x32xf32, #tpu.memory_space<vmem>>, vector<1x8x32xf32>
    tpu.vector_store %arg8[%c0_24, %c0_25, %c0_26], %37 {strides = array<i32>} : memref<1x8x32xf32, #tpu.memory_space<vmem>>, vector<1x8x32xf32>,
    %39 = vector.extract_strided_slice %8 {offsets = [0, 0, 8], sizes = [1, 8, 8], strides = [1, 1, 1]} : vector<1x8x32xf32> to vector<1x8x8xf32>
    %40 = vector.extract_strided_slice %10 {offsets = [0, 0, 8], sizes = [1, 8, 8], strides = [1, 1, 1]} : vector<1x8x32xf32> to vector<1x8x8xf32>
    %41 = vector.extract_strided_slice %12 {offsets = [0, 0, 8], sizes = [1, 8, 8], strides = [1, 1, 1]} : vector<1x8x32xf32> to vector<1x8x8xf32>
    "tpu.trace_start"() <{level = 10 : i32, message = "bqd,bkd->bqk"}> : () -> ()
    %cst_27 = arith.constant dense<0.000000e+00> : vector<1x8x8xf32>
    %42 = tpu.matmul %39, %40, %cst_27 {dimension_numbers = #tpu.dot_dimension_numbers<[2], [2], [1], [1], [0, 0, 0, 1, 1, 1], [0], [0]>} : vector<1x8x8xf32>, vector<1x8x8xf32>, vector<1x8x8xf32> -> vector<1x8x8xf32>
    "tpu.trace_stop"() : () -> ()
    %cst_28 = arith.constant dense<0xFF800000> : vector<1x8xf32>
    %43 = vector.multi_reduction <maximumf>, %42, %cst_28 [2] : vector<1x8x8xf32> to vector<1x8xf32>
    %44 = vector.shape_cast %43 : vector<1x8xf32> to vector<1x8x1xf32>
    %45 = vector.broadcast %44 : vector<1x8x1xf32> to vector<1x8x8xf32>
    %46 = arith.subf %42, %45 : vector<1x8x8xf32>
    %47 = math.exp %46 : vector<1x8x8xf32>
    %cst_29 = arith.constant dense<0.000000e+00> : vector<1x8xf32>
    %48 = vector.multi_reduction <add>, %47, %cst_29 [2] : vector<1x8x8xf32> to vector<1x8xf32>
    %49 = vector.shape_cast %48 : vector<1x8xf32> to vector<1x8x1xf32>
    %50 = vector.broadcast %49 : vector<1x8x1xf32> to vector<1x8x8xf32>
    %51 = arith.divf %47, %50 : vector<1x8x8xf32>
    %c0_30 = arith.constant 0 : index
    %c1 = arith.constant 1 : index
    %c0_31 = arith.constant 0 : index
    %c0_32 = arith.constant 0 : index
    %52 = vector.load %arg7[%c0_30, %c1, %c0_31, %c0_32] : memref<1x4x8x8xf32, #tpu.memory_space<vmem>>, vector<1x1x8x8xf32>
    %53 = vector.shape_cast %52 : vector<1x1x8x8xf32> to vector<1x8x8xf32>
    %54 = vector.shape_cast %51 : vector<1x8x8xf32> to vector<1x1x8x8xf32>
    tpu.vector_store %arg7[%c0_30, %c1, %c0_31, %c0_32], %54 {strides = array<i32>} : memref<1x4x8x8xf32, #tpu.memory_space<vmem>>, vector<1x1x8x8xf32>,
    "tpu.trace_start"() <{level = 10 : i32, message = "bqk,bkd->bqd"}> : () -> ()
    %cst_33 = arith.constant dense<0.000000e+00> : vector<1x8x8xf32>
    %55 = tpu.matmul %51, %41, %cst_33 {dimension_numbers = #tpu.dot_dimension_numbers<[2], [1], [1], [2], [0, 0, 0, 1, 1, 2], [0], [0]>} : vector<1x8x8xf32>, vector<1x8x8xf32>, vector<1x8x8xf32> -> vector<1x8x8xf32>
    "tpu.trace_stop"() : () -> ()
    %c8 = arith.constant 8 : index
    %c0_34 = arith.constant 0 : index
    %56 = vector.load %arg3[%c8, %c0_34] : memref<32x32xf32, #tpu.memory_space<vmem>>, vector<8x32xf32>
    %c0_35 = arith.constant 0 : index
    %c0_36 = arith.constant 0 : index
    %c0_37 = arith.constant 0 : index
    %57 = vector.load %arg8[%c0_35, %c0_36, %c0_37] : memref<1x8x32xf32, #tpu.memory_space<vmem>>, vector<1x8x32xf32>
    %58 = vector.shape_cast %55 : vector<1x8x8xf32> to vector<8x8xf32>
    %cst_38 = arith.constant dense<0.000000e+00> : vector<8x32xf32>
    %59 = tpu.matmul %58, %56, %cst_38 {dimension_numbers = #tpu.dot_dimension_numbers<[1], [0], [0], [1], [0, 0, 1, 1], [], []>} : vector<8x8xf32>, vector<8x32xf32>, vector<8x32xf32> -> vector<8x32xf32>
    %60 = vector.shape_cast %59 : vector<8x32xf32> to vector<1x8x32xf32>
    %61 = arith.addf %57, %60 : vector<1x8x32xf32>
    %c0_39 = arith.constant 0 : index
    %c0_40 = arith.constant 0 : index
    %c0_41 = arith.constant 0 : index
    %62 = vector.load %arg8[%c0_39, %c0_40, %c0_41] : memref<1x8x32xf32, #tpu.memory_space<vmem>>, vector<1x8x32xf32>
    tpu.vector_store %arg8[%c0_39, %c0_40, %c0_41], %61 {strides = array<i32>} : memref<1x8x32xf32, #tpu.memory_space<vmem>>, vector<1x8x32xf32>,
    %63 = vector.extract_strided_slice %8 {offsets = [0, 0, 16], sizes = [1, 8, 8], strides = [1, 1, 1]} : vector<1x8x32xf32> to vector<1x8x8xf32>
    %64 = vector.extract_strided_slice %10 {offsets = [0, 0, 16], sizes = [1, 8, 8], strides = [1, 1, 1]} : vector<1x8x32xf32> to vector<1x8x8xf32>
    %65 = vector.extract_strided_slice %12 {offsets = [0, 0, 16], sizes = [1, 8, 8], strides = [1, 1, 1]} : vector<1x8x32xf32> to vector<1x8x8xf32>
    "tpu.trace_start"() <{level = 10 : i32, message = "bqd,bkd->bqk"}> : () -> ()
    %cst_42 = arith.constant dense<0.000000e+00> : vector<1x8x8xf32>
    %66 = tpu.matmul %63, %64, %cst_42 {dimension_numbers = #tpu.dot_dimension_numbers<[2], [2], [1], [1], [0, 0, 0, 1, 1, 1], [0], [0]>} : vector<1x8x8xf32>, vector<1x8x8xf32>, vector<1x8x8xf32> -> vector<1x8x8xf32>
    "tpu.trace_stop"() : () -> ()
    %cst_43 = arith.constant dense<0xFF800000> : vector<1x8xf32>
    %67 = vector.multi_reduction <maximumf>, %66, %cst_43 [2] : vector<1x8x8xf32> to vector<1x8xf32>
    %68 = vector.shape_cast %67 : vector<1x8xf32> to vector<1x8x1xf32>
    %69 = vector.broadcast %68 : vector<1x8x1xf32> to vector<1x8x8xf32>
    %70 = arith.subf %66, %69 : vector<1x8x8xf32>
    %71 = math.exp %70 : vector<1x8x8xf32>
    %cst_44 = arith.constant dense<0.000000e+00> : vector<1x8xf32>
    %72 = vector.multi_reduction <add>, %71, %cst_44 [2] : vector<1x8x8xf32> to vector<1x8xf32>
    %73 = vector.shape_cast %72 : vector<1x8xf32> to vector<1x8x1xf32>
    %74 = vector.broadcast %73 : vector<1x8x1xf32> to vector<1x8x8xf32>
    %75 = arith.divf %71, %74 : vector<1x8x8xf32>
    %c0_45 = arith.constant 0 : index
    %c2 = arith.constant 2 : index
    %c0_46 = arith.constant 0 : index
    %c0_47 = arith.constant 0 : index
    %76 = vector.load %arg7[%c0_45, %c2, %c0_46, %c0_47] : memref<1x4x8x8xf32, #tpu.memory_space<vmem>>, vector<1x1x8x8xf32>
    %77 = vector.shape_cast %76 : vector<1x1x8x8xf32> to vector<1x8x8xf32>
    %78 = vector.shape_cast %75 : vector<1x8x8xf32> to vector<1x1x8x8xf32>
    tpu.vector_store %arg7[%c0_45, %c2, %c0_46, %c0_47], %78 {strides = array<i32>} : memref<1x4x8x8xf32, #tpu.memory_space<vmem>>, vector<1x1x8x8xf32>,
    "tpu.trace_start"() <{level = 10 : i32, message = "bqk,bkd->bqd"}> : () -> ()
    %cst_48 = arith.constant dense<0.000000e+00> : vector<1x8x8xf32>
    %79 = tpu.matmul %75, %65, %cst_48 {dimension_numbers = #tpu.dot_dimension_numbers<[2], [1], [1], [2], [0, 0, 0, 1, 1, 2], [0], [0]>} : vector<1x8x8xf32>, vector<1x8x8xf32>, vector<1x8x8xf32> -> vector<1x8x8xf32>
    "tpu.trace_stop"() : () -> ()
    %c16 = arith.constant 16 : index
    %c0_49 = arith.constant 0 : index
    %80 = vector.load %arg3[%c16, %c0_49] : memref<32x32xf32, #tpu.memory_space<vmem>>, vector<8x32xf32>
    %c0_50 = arith.constant 0 : index
    %c0_51 = arith.constant 0 : index
    %c0_52 = arith.constant 0 : index
    %81 = vector.load %arg8[%c0_50, %c0_51, %c0_52] : memref<1x8x32xf32, #tpu.memory_space<vmem>>, vector<1x8x32xf32>
    %82 = vector.shape_cast %79 : vector<1x8x8xf32> to vector<8x8xf32>
    %cst_53 = arith.constant dense<0.000000e+00> : vector<8x32xf32>
    %83 = tpu.matmul %82, %80, %cst_53 {dimension_numbers = #tpu.dot_dimension_numbers<[1], [0], [0], [1], [0, 0, 1, 1], [], []>} : vector<8x8xf32>, vector<8x32xf32>, vector<8x32xf32> -> vector<8x32xf32>
    %84 = vector.shape_cast %83 : vector<8x32xf32> to vector<1x8x32xf32>
    %85 = arith.addf %81, %84 : vector<1x8x32xf32>
    %c0_54 = arith.constant 0 : index
    %c0_55 = arith.constant 0 : index
    %c0_56 = arith.constant 0 : index
    %86 = vector.load %arg8[%c0_54, %c0_55, %c0_56] : memref<1x8x32xf32, #tpu.memory_space<vmem>>, vector<1x8x32xf32>
    tpu.vector_store %arg8[%c0_54, %c0_55, %c0_56], %85 {strides = array<i32>} : memref<1x8x32xf32, #tpu.memory_space<vmem>>, vector<1x8x32xf32>,
    %87 = vector.extract_strided_slice %8 {offsets = [0, 0, 24], sizes = [1, 8, 8], strides = [1, 1, 1]} : vector<1x8x32xf32> to vector<1x8x8xf32>
    %88 = vector.extract_strided_slice %10 {offsets = [0, 0, 24], sizes = [1, 8, 8], strides = [1, 1, 1]} : vector<1x8x32xf32> to vector<1x8x8xf32>
    %89 = vector.extract_strided_slice %12 {offsets = [0, 0, 24], sizes = [1, 8, 8], strides = [1, 1, 1]} : vector<1x8x32xf32> to vector<1x8x8xf32>
    "tpu.trace_start"() <{level = 10 : i32, message = "bqd,bkd->bqk"}> : () -> ()
    %cst_57 = arith.constant dense<0.000000e+00> : vector<1x8x8xf32>
    %90 = tpu.matmul %87, %88, %cst_57 {dimension_numbers = #tpu.dot_dimension_numbers<[2], [2], [1], [1], [0, 0, 0, 1, 1, 1], [0], [0]>} : vector<1x8x8xf32>, vector<1x8x8xf32>, vector<1x8x8xf32> -> vector<1x8x8xf32>
    "tpu.trace_stop"() : () -> ()
    %cst_58 = arith.constant dense<0xFF800000> : vector<1x8xf32>
    %91 = vector.multi_reduction <maximumf>, %90, %cst_58 [2] : vector<1x8x8xf32> to vector<1x8xf32>
    %92 = vector.shape_cast %91 : vector<1x8xf32> to vector<1x8x1xf32>
    %93 = vector.broadcast %92 : vector<1x8x1xf32> to vector<1x8x8xf32>
    %94 = arith.subf %90, %93 : vector<1x8x8xf32>
    %95 = math.exp %94 : vector<1x8x8xf32>
    %cst_59 = arith.constant dense<0.000000e+00> : vector<1x8xf32>
    %96 = vector.multi_reduction <add>, %95, %cst_59 [2] : vector<1x8x8xf32> to vector<1x8xf32>
    %97 = vector.shape_cast %96 : vector<1x8xf32> to vector<1x8x1xf32>
    %98 = vector.broadcast %97 : vector<1x8x1xf32> to vector<1x8x8xf32>
    %99 = arith.divf %95, %98 : vector<1x8x8xf32>
    %c0_60 = arith.constant 0 : index
    %c3 = arith.constant 3 : index
    %c0_61 = arith.constant 0 : index
    %c0_62 = arith.constant 0 : index
    %100 = vector.load %arg7[%c0_60, %c3, %c0_61, %c0_62] : memref<1x4x8x8xf32, #tpu.memory_space<vmem>>, vector<1x1x8x8xf32>
    %101 = vector.shape_cast %100 : vector<1x1x8x8xf32> to vector<1x8x8xf32>
    %102 = vector.shape_cast %99 : vector<1x8x8xf32> to vector<1x1x8x8xf32>
    tpu.vector_store %arg7[%c0_60, %c3, %c0_61, %c0_62], %102 {strides = array<i32>} : memref<1x4x8x8xf32, #tpu.memory_space<vmem>>, vector<1x1x8x8xf32>,
    "tpu.trace_start"() <{level = 10 : i32, message = "bqk,bkd->bqd"}> : () -> ()
    %cst_63 = arith.constant dense<0.000000e+00> : vector<1x8x8xf32>
    %103 = tpu.matmul %99, %89, %cst_63 {dimension_numbers = #tpu.dot_dimension_numbers<[2], [1], [1], [2], [0, 0, 0, 1, 1, 2], [0], [0]>} : vector<1x8x8xf32>, vector<1x8x8xf32>, vector<1x8x8xf32> -> vector<1x8x8xf32>
    "tpu.trace_stop"() : () -> ()
    %c24 = arith.constant 24 : index
    %c0_64 = arith.constant 0 : index
    %104 = vector.load %arg3[%c24, %c0_64] : memref<32x32xf32, #tpu.memory_space<vmem>>, vector<8x32xf32>
    %c0_65 = arith.constant 0 : index
    %c0_66 = arith.constant 0 : index
    %c0_67 = arith.constant 0 : index
    %105 = vector.load %arg8[%c0_65, %c0_66, %c0_67] : memref<1x8x32xf32, #tpu.memory_space<vmem>>, vector<1x8x32xf32>
    %106 = vector.shape_cast %103 : vector<1x8x8xf32> to vector<8x8xf32>
    %cst_68 = arith.constant dense<0.000000e+00> : vector<8x32xf32>
    %107 = tpu.matmul %106, %104, %cst_68 {dimension_numbers = #tpu.dot_dimension_numbers<[1], [0], [0], [1], [0, 0, 1, 1], [], []>} : vector<8x8xf32>, vector<8x32xf32>, vector<8x32xf32> -> vector<8x32xf32>
    %108 = vector.shape_cast %107 : vector<8x32xf32> to vector<1x8x32xf32>
    %109 = arith.addf %105, %108 : vector<1x8x32xf32>
    %c0_69 = arith.constant 0 : index
    %c0_70 = arith.constant 0 : index
    %c0_71 = arith.constant 0 : index
    %110 = vector.load %arg8[%c0_69, %c0_70, %c0_71] : memref<1x8x32xf32, #tpu.memory_space<vmem>>, vector<1x8x32xf32>
    tpu.vector_store %arg8[%c0_69, %c0_70, %c0_71], %109 {strides = array<i32>} : memref<1x8x32xf32, #tpu.memory_space<vmem>>, vector<1x8x32xf32>,
    %c0_72 = arith.constant 0 : index
    %c0_73 = arith.constant 0 : index
    %c0_74 = arith.constant 0 : index
    %111 = vector.load %arg8[%c0_72, %c0_73, %c0_74] : memref<1x8x32xf32, #tpu.memory_space<vmem>>, vector<1x8x32xf32>
    %c0_75 = arith.constant 0 : index
    %c0_76 = arith.constant 0 : index
    %112 = vector.load %arg5[%c0_75, %c0_76] : memref<1x32xf32, #tpu.memory_space<vmem>>, vector<1x32xf32>
    %113 = vector.shape_cast %112 : vector<1x32xf32> to vector<1x1x32xf32>
    %114 = vector.broadcast %113 : vector<1x1x32xf32> to vector<1x8x32xf32>
    %115 = arith.addf %111, %114 : vector<1x8x32xf32>
    %c0_77 = arith.constant 0 : index
    %c0_78 = arith.constant 0 : index
    %c0_79 = arith.constant 0 : index
    %116 = vector.load %arg6[%c0_77, %c0_78, %c0_79] : memref<1x8x32xf32, #tpu.memory_space<vmem>>, vector<1x8x32xf32>
    tpu.vector_store %arg6[%c0_77, %c0_78, %c0_79], %115 {strides = array<i32>} : memref<1x8x32xf32, #tpu.memory_space<vmem>>, vector<1x8x32xf32>,
    return
  }
  func.func @transform_0(%arg0: i32) -> (i32, i32, i32) {
    %c0_i32 = arith.constant 0 : i32
    %c0_i32_0 = arith.constant 0 : i32
    %c0_i32_1 = arith.constant 0 : i32
    return %arg0, %c0_i32, %c0_i32_0 : i32, i32, i32
  }
  func.func @transform_1(%arg0: i32) -> (i32, i32) {
    %c0_i32 = arith.constant 0 : i32
    %c0_i32_0 = arith.constant 0 : i32
    %c0_i32_1 = arith.constant 0 : i32
    return %c0_i32, %c0_i32_0 : i32, i32
  }
  func.func @transform_2(%arg0: i32) -> (i32, i32) {
    %c0_i32 = arith.constant 0 : i32
    %c0_i32_0 = arith.constant 0 : i32
    %c0_i32_1 = arith.constant 0 : i32
    return %c0_i32, %c0_i32_0 : i32, i32
  }
  func.func @transform_3(%arg0: i32) -> (i32, i32) {
    %c0_i32 = arith.constant 0 : i32
    %c0_i32_0 = arith.constant 0 : i32
    %c0_i32_1 = arith.constant 0 : i32
    return %c0_i32, %c0_i32_0 : i32, i32
  }
  func.func @transform_4(%arg0: i32) -> (i32, i32) {
    %c0_i32 = arith.constant 0 : i32
    %c0_i32_0 = arith.constant 0 : i32
    %c0_i32_1 = arith.constant 0 : i32
    return %c0_i32, %c0_i32_0 : i32, i32
  }
  func.func @transform_5(%arg0: i32) -> (i32, i32, i32) {
    %c0_i32 = arith.constant 0 : i32
    %c0_i32_0 = arith.constant 0 : i32
    %c0_i32_1 = arith.constant 0 : i32
    return %arg0, %c0_i32, %c0_i32_0 : i32, i32, i32
  }
  func.func @transform_6(%arg0: i32) -> (i32, i32, i32, i32) {
    %c0_i32 = arith.constant 0 : i32
    %c0_i32_0 = arith.constant 0 : i32
    %c0_i32_1 = arith.constant 0 : i32
    %c0_i32_2 = arith.constant 0 : i32
    return %arg0, %c0_i32, %c0_i32_0, %c0_i32_1 : i32, i32, i32, i32
  }
}

</mosaic_0001>

<llo_original>
// kernel: attention_forward.1
$region0: #{attention_forward.1}
  #allocation0 [shape = 'u32[]', space=smem, size = 0x4, offset = 0x4, fixed_abs, tag = 'smem constant byte address 0x4 - core index']
  #allocation1 [shape = 'u32[144,128]{1,0:T(1,128)}', space=vmem, size = 0x12000, scoped, tag = 'internal scratch']
  #allocation2 [shape = 'f32[1,8,32]{2,1,0:T(8,128)}', space=vmem, size = 0x1000, scoped, tag = 'scratch operand']
  %s0 = inlined_call_operand.vmem [shape: f32[2,8,32], index: 0, kind: input, shape index: {}]
  %s1 = inlined_call_operand.vmem [shape: f32[32,96], index: 1, kind: input, shape index: {}]
  %s2 = inlined_call_operand.vmem [shape: f32[32,32], index: 2, kind: input, shape index: {}]
  %s3 = inlined_call_operand.vmem [shape: f32[1,96], index: 3, kind: input, shape index: {}]
  %s4 = inlined_call_operand.vmem [shape: f32[1,32], index: 4, kind: input, shape index: {}]
  %s5 = inlined_call_operand.hbm [shape: f32[2,8,32], index: 5, kind: output, shape index: {0}]
  %s6 = inlined_call_operand.hbm [shape: f32[2,4,8,8], index: 6, kind: output, shape index: {1}]
  %7 = xla_tuple %s5, %s6
  %s8 = sld [smem:[#allocation0]]
  $region61: #{attention_forward.1} parent=0
    _
  %s10 = ssub.s32 1, %s8
  %s11 = scalar_select 0, %s10, %s8
  $region1: #{attention_forward.1} parent=0
    #allocation3 [shape = 'u8[8192]{0}', space=vmem, size = 0x2000, scoped, tag = 'output window, operand 0']
    #allocation4 [shape = 's32[2]{0}', space=sflag, size = 0x8, scoped, tag = 'scoped memory for attention_forward.1']
    #allocation5 [shape = 'u8[32768]{0}', space=vmem, size = 0x8000, scoped, tag = 'output window, operand 1']
    #allocation6 [shape = 's32[2]{0}', space=sflag, size = 0x8, scoped, tag = 'scoped memory for attention_forward.1']
    %12 = vsyncpa [#allocation4], 0
    %s13 = scalar_lea.sflag [#allocation4], 1
    %14 = vsyncpa %s13, 0
    %15 = vsyncpa [#allocation6], 0
    %s16 = scalar_lea.sflag [#allocation6], 1
    %17 = vsyncpa %s16, 0
    loop: start=0, step=1, limit=4
    $region2: #{attention_forward.1} parent=1 // loop_pre_header
      _
    $region3: #{attention_forward.1} parent=1 // loop_header
      %s19 = sphi 0, %s23
      %p20 = scmp.ge.s32.totalorder %s19, 4
      %s29 = sphi 0, %s31
      %s32 = sphi 0, %s29
      %s33 = sphi 0, %s32
      %s49 = sphi 0, %s33
      %s53 = sphi 0, %s53
      %s55 = sphi 0, %s53
      %s56 = sphi 0, %s55
      %s70 = sphi 0, %s56
      %s74 = sphi 0, %s74
      %s76 = sphi 0, %s74
      %s77 = sphi 0, %s76
      %s91 = sphi 0, %s77
      %s95 = sphi 0, %s95
      %s97 = sphi 0, %s95
      %s98 = sphi 0, %s97
      %s112 = sphi 0, %s98
      %s116 = sphi 0, %s116
      %s118 = sphi 0, %s116
      %s119 = sphi 0, %s118
      %s133 = sphi 0, %s119
      %s139 = sphi 0, %s141
      %s142 = sphi 0, %s139
      %s143 = sphi 0, %s142
      %s159 = sphi 0, %s143
      %s165 = sphi 0, %s167
      %s168 = sphi 0, %s165
      %s169 = sphi 0, %s168
      %s185 = sphi 0, %s169
    $region4: #{attention_forward.1} parent=1 // loop_header_branch
      %22 = sbr.rel (%p20) target = $region8
    $region5: #{attention_forward.1} parent=1 // loop_body
      %s24 = ssub.s32 %s19, 1
      %s25 = ssub.s32 %s19, 2
      %s26 = sadd.s32 %s19, 1
      %s27 = ssub.s32 %s19, %s26
      %p28 = scmp.eq.s32.totalorder %s27, 0
      %s30 = sadd.s32 %s29, 1
      %s31 = scalar_select %p28, %s29, %s30
      %p34 = pneg %p28
      %p35 = scmp.eq.s32.totalorder %s19, 1
      %p36 = por %p34, %p35
      %p37 = scmp.ne.s32.totalorder %s29, %s32
      %p38 = scmp.eq.s32.totalorder %s19, 0
      %p39 = por %p37, %p38
      %p40 = scmp.ne.s32.totalorder %s29, %s32
      %p41 = scmp.eq.s32.totalorder %s24, 1
      %p42 = por %p40, %p41
      %p43 = scmp.ne.s32.totalorder %s32, %s33
      %p44 = scmp.eq.s32.totalorder %s24, 0
      %p45 = por %p43, %p44
      %p46 = scmp.ne.s32.totalorder %s32, %s33
      %p47 = scmp.eq.s32.totalorder %s25, 1
      %p48 = por %p46, %p47
      %p50 = scmp.ne.s32.totalorder %s33, %s49
      %p51 = scmp.eq.s32.totalorder %s25, 0
      %p52 = por %p50, %p51
      %s54 = sadd.s32 %s53, 1
      %p57 = scmp.eq.s32.totalorder %s19, 1
      %p58 = scmp.ne.s32.totalorder %s53, %s55
      %p59 = scmp.eq.s32.totalorder %s19, 0
      %p60 = por %p58, %p59
      %p61 = scmp.ne.s32.totalorder %s53, %s55
      %p62 = scmp.eq.s32.totalorder %s24, 1
      %p63 = por %p61, %p62
      %p64 = scmp.ne.s32.totalorder %s55, %s56
      %p65 = scmp.eq.s32.totalorder %s24, 0
      %p66 = por %p64, %p65
      %p67 = scmp.ne.s32.totalorder %s55, %s56
      %p68 = scmp.eq.s32.totalorder %s25, 1
      %p69 = por %p67, %p68
      %p71 = scmp.ne.s32.totalorder %s56, %s70
      %p72 = scmp.eq.s32.totalorder %s25, 0
      %p73 = por %p71, %p72
      %s75 = sadd.s32 %s74, 1
      %p78 = scmp.eq.s32.totalorder %s19, 1
      %p79 = scmp.ne.s32.totalorder %s74, %s76
      %p80 = scmp.eq.s32.totalorder %s19, 0
      %p81 = por %p79, %p80
      %p82 = scmp.ne.s32.totalorder %s74, %s76
      %p83 = scmp.eq.s32.totalorder %s24, 1
      %p84 = por %p82, %p83
      %p85 = scmp.ne.s32.totalorder %s76, %s77
      %p86 = scmp.eq.s32.totalorder %s24, 0
      %p87 = por %p85, %p86
      %p88 = scmp.ne.s32.totalorder %s76, %s77
      %p89 = scmp.eq.s32.totalorder %s25, 1
      %p90 = por %p88, %p89
      %p92 = scmp.ne.s32.totalorder %s77, %s91
      %p93 = scmp.eq.s32.totalorder %s25, 0
      %p94 = por %p92, %p93
      %s96 = sadd.s32 %s95, 1
      %p99 = scmp.eq.s32.totalorder %s19, 1
      %p100 = scmp.ne.s32.totalorder %s95, %s97
      %p101 = scmp.eq.s32.totalorder %s19, 0
      %p102 = por %p100, %p101
      %p103 = scmp.ne.s32.totalorder %s95, %s97
      %p104 = scmp.eq.s32.totalorder %s24, 1
      %p105 = por %p103, %p104
      %p106 = scmp.ne.s32.totalorder %s97, %s98
      %p107 = scmp.eq.s32.totalorder %s24, 0
      %p108 = por %p106, %p107
      %p109 = scmp.ne.s32.totalorder %s97, %s98
      %p110 = scmp.eq.s32.totalorder %s25, 1
      %p111 = por %p109, %p110
      %p113 = scmp.ne.s32.totalorder %s98, %s112
      %p114 = scmp.eq.s32.totalorder %s25, 0
      %p115 = por %p113, %p114
      %s117 = sadd.s32 %s116, 1
      %p120 = scmp.eq.s32.totalorder %s19, 1
      %p121 = scmp.ne.s32.totalorder %s116, %s118
      %p122 = scmp.eq.s32.totalorder %s19, 0
      %p123 = por %p121, %p122
      %p124 = scmp.ne.s32.totalorder %s116, %s118
      %p125 = scmp.eq.s32.totalorder %s24, 1
      %p126 = por %p124, %p125
      %p127 = scmp.ne.s32.totalorder %s118, %s119
      %p128 = scmp.eq.s32.totalorder %s24, 0
      %p129 = por %p127, %p128
      %p130 = scmp.ne.s32.totalorder %s118, %s119
      %p131 = scmp.eq.s32.totalorder %s25, 1
      %p132 = por %p130, %p131
      %p134 = scmp.ne.s32.totalorder %s119, %s133
      %p135 = scmp.eq.s32.totalorder %s25, 0
      %p136 = por %p134, %p135
      %s137 = ssub.s32 %s19, %s26
      %p138 = scmp.eq.s32.totalorder %s137, 0
      %s140 = sadd.s32 %s139, 1
      %s141 = scalar_select %p138, %s139, %s140
      %p144 = pneg %p138
      %p145 = scmp.eq.s32.totalorder %s19, 1
      %p146 = por %p144, %p145
      %p147 = scmp.ne.s32.totalorder %s139, %s142
      %p148 = scmp.eq.s32.totalorder %s19, 0
      %p149 = por %p147, %p148
      %p150 = scmp.ne.s32.totalorder %s139, %s142
      %p151 = scmp.eq.s32.totalorder %s24, 1
      %p152 = por %p150, %p151
      %p153 = scmp.ne.s32.totalorder %s142, %s143
      %p154 = scmp.eq.s32.totalorder %s24, 0
      %p155 = por %p153, %p154
      %p156 = scmp.ne.s32.totalorder %s142, %s143
      %p157 = scmp.eq.s32.totalorder %s25, 1
      %p158 = por %p156, %p157
      %p160 = scmp.ne.s32.totalorder %s143, %s159
      %p161 = scmp.eq.s32.totalorder %s25, 0
      %p162 = por %p160, %p161
      %s163 = ssub.s32 %s19, %s26
      %p164 = scmp.eq.s32.totalorder %s163, 0
      %s166 = sadd.s32 %s165, 1
      %s167 = scalar_select %p164, %s165, %s166
      %p170 = pneg %p164
      %p171 = scmp.eq.s32.totalorder %s19, 1
      %p172 = por %p170, %p171
      %p173 = scmp.ne.s32.totalorder %s165, %s168
      %p174 = scmp.eq.s32.totalorder %s19, 0
      %p175 = por %p173, %p174
      %p176 = scmp.ne.s32.totalorder %s165, %s168
      %p177 = scmp.eq.s32.totalorder %s24, 1
      %p178 = por %p176, %p177
      %p179 = scmp.ne.s32.totalorder %s168, %s169
      %p180 = scmp.eq.s32.totalorder %s24, 0
      %p181 = por %p179, %p180
      %p182 = scmp.ne.s32.totalorder %s168, %s169
      %p183 = scmp.eq.s32.totalorder %s25, 1
      %p184 = por %p182, %p183
      %p186 = scmp.ne.s32.totalorder %s169, %s185
      %p187 = scmp.eq.s32.totalorder %s25, 0
      %p188 = por %p186, %p187
      %p189 = scmp.le.s32.totalorder 1, %s19
      %p190 = scmp.lt.s32.totalorder %s19, 3
      %p191 = pnand %p189, %p190
      %p192 = pneg %p191
      // Predicated region
      $region9: #{attention_forward.1} parent=5 // pred_check
        _
      $region10: #{attention_forward.1} parent=5 // pred_check_branch
        %194 = sbr.rel (%p191) target = $region12
      $region11: #{attention_forward.1} parent=5 // pred_region
        %s195 = ssub.s32 %s19, 1
        // Predicated region
        $region13: #{attention_forward.1} parent=11 // pred_check
          %p196 = pneg %p66
        $region14: #{attention_forward.1} parent=11 // pred_check_branch
          %198 = sbr.rel (%p196) target = $region16
        $region15: #{attention_forward.1} parent=11 // pred_region
          _
        $region16: #{attention_forward.1} parent=11 // pred_fallthru
          _
        // Predicated region
        $region17: #{attention_forward.1} parent=11 // pred_check
          %p199 = pneg %p87
        $region18: #{attention_forward.1} parent=11 // pred_check_branch
          %201 = sbr.rel (%p199) target = $region20
        $region19: #{attention_forward.1} parent=11 // pred_region
          _
        $region20: #{attention_forward.1} parent=11 // pred_fallthru
          _
        // Predicated region
        $region21: #{attention_forward.1} parent=11 // pred_check
          %p202 = pneg %p108
        $region22: #{attention_forward.1} parent=11 // pred_check_branch
          %204 = sbr.rel (%p202) target = $region24
        $region23: #{attention_forward.1} parent=11 // pred_region
          _
        $region24: #{attention_forward.1} parent=11 // pred_fallthru
          _
        // Predicated region
        $region25: #{attention_forward.1} parent=11 // pred_check
          %p205 = pneg %p129
        $region26: #{attention_forward.1} parent=11 // pred_check_branch
          %207 = sbr.rel (%p205) target = $region28
        $region27: #{attention_forward.1} parent=11 // pred_region
          _
        $region28: #{attention_forward.1} parent=11 // pred_fallthru
          _
      $region12: #{attention_forward.1} parent=5 // pred_fallthru
        _
      %p208 = scmp.lt.s32.totalorder %s19, 2
      // Predicated region
      $region29: #{attention_forward.1} parent=5 // pred_check
        %p209 = pneg %p208
      $region30: #{attention_forward.1} parent=5 // pred_check_branch
        %211 = sbr.rel (%p209) target = $region32
      $region31: #{attention_forward.1} parent=5 // pred_region
        // Predicated region
        $region33: #{attention_forward.1} parent=31 // pred_check
          %p212 = pneg %p39
        $region34: #{attention_forward.1} parent=31 // pred_check_branch
          %214 = sbr.rel (%p212) target = $region36
        $region35: #{attention_forward.1} parent=31 // pred_region
          %p215 = scmp.lt.s32.totalorder %s19, 1
          %s216 = scalar_select %p215, %s19, 1
          %s217 = smul.addr %s216, 8
          %s218 = scalar_lea.vmem %s0, %s217
        $region36: #{attention_forward.1} parent=31 // pred_fallthru
          _
      $region32: #{attention_forward.1} parent=5 // pred_fallthru
        _
      %p219 = scmp.le.s32.totalorder 1, %s19
      %p220 = scmp.lt.s32.totalorder %s19, 3
      %p221 = pnand %p219, %p220
      %p222 = pneg %p221
      // Predicated region
      $region37: #{attention_forward.1} parent=5 // pred_check
        _
      $region38: #{attention_forward.1} parent=5 // pred_check_branch
        %224 = sbr.rel (%p221) target = $region40
      $region39: #{attention_forward.1} parent=5 // pred_region
        %s225 = ssub.s32 %s19, 1
        %p226 = scmp.lt.s32.totalorder %s24, 1
        %s227 = scalar_select %p226, %s24, 1
        %s228 = smul.addr %s227, 8
        %s229 = scalar_lea.vmem %s0, %s228
        %p230 = pneg %p45
        %p231 = pneg %p42
        %p232 = pneg %p66
        %p233 = pneg %p63
        %p234 = pneg %p87
        %p235 = pneg %p84
        %p236 = pneg %p108
        %p237 = pneg %p105
        %p238 = pneg %p129
        %p239 = pneg %p126
        %p240 = pneg %p155
        %p241 = pneg %p152
        %s242 = sand.u32 %s142, 1
        %s243 = scalar_lea.sflag [#allocation4], %s242
        %s244 = sand.u32 %s142, 1
        %s245 = smul.addr %s244, 8
        %s246 = scalar_lea.vmem [#allocation3], %s245
        %p247 = pneg %p181
        %p248 = pneg %p178
        %s249 = sand.u32 %s168, 1
        %s250 = scalar_lea.sflag [#allocation6], %s249
        %s251 = sand.u32 %s168, 1
        %s252 = smul.addr %s251, 32
        %s253 = scalar_lea.vmem [#allocation5], %s252
        %p254 = scmp.lt.s32.totalorder %s24, 1
        %s255 = scalar_select %p254, %s24, 1
        %s256 = smul.addr %s255, 8
        %s257 = scalar_lea.vmem %s0, %s256
        %v258 = vld [vmem:[%s257] sm:$0xff]
        %v259 = vld [vmem:[%s1] sm:$0xff]
        %v260 = vld [vmem:[%s1 + $0x8] sm:$0xff]
        %v261 = vld [vmem:[%s1 + $0x10] sm:$0xff]
        %v262 = vld [vmem:[%s1 + $0x18] sm:$0xff]
        %v263 = vld [vmem:[%s3] sm:$0x1]
        %v265 = vlaneseq
        %v266 = vshrl.u32 %v265, 7
        %v267 = vsub.s32 0, %v266
        %v268 = vrot.slane %v263, %v267
        %vm270 = vcmask 261120
        %v272 = vsel %vm270, %v258, 0
        %274 = vmatprep.subr.mxu0 0.0
        %275 = vmatpush1.msra.mxu0 %v259
        %276 = vmatprep.subr.mxu0 0.0
        %277 = vmatpush1.msra.mxu0 %v260
        %278 = vmatprep.subr.mxu0 0.0
        %279 = vmatpush1.msra.mxu0 %v261
        %280 = vmatprep.subr.mxu0 0.0
        %281 = vmatpush1.msra.mxu0 %v262
        %282 = vmatprep.subr.mxu0 0.0
        %283 = vmatpush1.msra.mxu0 0.0
        %284 = vmatprep.subr.mxu0 0.0
        %285 = vmatpush1.msra.mxu0 0.0
        %286 = vmatprep.subr.mxu0 0.0
        %287 = vmatpush1.msra.mxu0 0.0
        %288 = vmatprep.subr.mxu0 0.0
        %289 = vmatpush1.msra.mxu0 0.0
        %290 = vmatprep.subr.mxu0 0.0
        %291 = vmatpush1.msra.mxu0 0.0
        %292 = vmatprep.subr.mxu0 0.0
        %293 = vmatpush1.msra.mxu0 0.0
        %294 = vmatprep.subr.mxu0 0.0
        %295 = vmatpush1.msra.mxu0 0.0
        %296 = vmatprep.subr.mxu0 0.0
        %297 = vmatpush1.msra.mxu0 0.0
        %298 = vmatprep.subr.mxu0 0.0
        %299 = vmatpush1.msra.mxu0 0.0
        %300 = vmatprep.subr.mxu0 0.0
        %301 = vmatpush1.msra.mxu0 0.0
        %302 = vmatprep.subr.mxu0 0.0
        %303 = vmatpush1.msra.mxu0 0.0
        %304 = vmatprep.subr.mxu0 0.0
        %305 = vmatpush1.msra.mxu0 0.0
        %306 = vmatprep.subr.mxu0 0.0
        %307 = vmatpush1.msra.mxu0 0.0
        %308 = vmatprep.subr.mxu0 0.0
        %309 = vmatpush1.msra.mxu0 0.0
        %310 = vmatprep.subr.mxu0 0.0
        %311 = vmatpush1.msra.mxu0 0.0
        %312 = vmatprep.subr.mxu0 0.0
        %313 = vmatpush1.msra.mxu0 0.0
        %314 = vmatprep.subr.mxu0 0.0
        %315 = vmatpush1.msra.mxu0 0.0
        %316 = vmatprep.subr.mxu0 0.0
        %317 = vmatpush1.msra.mxu0 0.0
        %318 = vmatprep.subr.mxu0 0.0
        %319 = vmatpush1.msra.mxu0 0.0
        %320 = vmatprep.subr.mxu0 0.0
        %321 = vmatpush1.msra.mxu0 0.0
        %322 = vmatprep.subr.mxu0 0.0
        %323 = vmatpush1.msra.mxu0 0.0
        %324 = vmatprep.subr.mxu0 0.0
        %325 = vmatpush1.msra.mxu0 0.0
        %326 = vmatprep.subr.mxu0 0.0
        %327 = vmatpush1.msra.mxu0 0.0
        %328 = vmatprep.subr.mxu0 0.0
        %329 = vmatpush1.msra.mxu0 0.0
        %330 = vmatprep.subr.mxu0 0.0
        %331 = vmatpush1.msra.mxu0 0.0
        %332 = vmatprep.subr.mxu0 0.0
        %333 = vmatpush1.msra.mxu0 0.0
        %334 = vmatprep.subr.mxu0 0.0
        %335 = vmatpush1.msra.mxu0 0.0
        %336 = vmatprep.subr.mxu0 0.0
        %337 = vmatpush1.msra.mxu0 0.0
        %338 = vmatprep.mubr.f32.mxu0 0.0
        %339 = vmatmul.mubr.f32.gmra.mrb[0].mxu0 %v272
        %v340 = vpop.f32.mrb[0].mxu0
        %v341 = vadd.f32 %v268, %v340
        %v342 = vpop.f32.mrb[0].mxu0
        %343 = vdwg.mxu0
        %344 = vst.msk [vmem:[#allocation2] sm:$0xff] %vm270, 0.0
        %346 = vrot.lane.b32.xlu0 %v341, 96
        %v347 = vpop.permute.xlu0 %346
        %vm348 = vcmask 64512
        %v349 = vsel %vm348, %v341, 0
        %v351 = vsel %vm348, %v347, 0
        %353 = vmatprep.subr.mxu0 0.0
        %354 = vmatpush1.xpose.msra.mxu0 %v351
        %355 = vmatprep.subr.mxu0 0.0
        %356 = vmatpush1.xpose.msra.mxu0 0.0
        %357 = vmatprep.subr.mxu0 0.0
        %358 = vmatpush1.xpose.msra.mxu0 0.0
        %359 = vmatprep.subr.mxu0 0.0
        %360 = vmatpush1.xpose.msra.mxu0 0.0
        %361 = vmatprep.subr.mxu0 0.0
        %362 = vmatpush1.xpose.msra.mxu0 0.0
        %363 = vmatprep.subr.mxu0 0.0
        %364 = vmatpush1.xpose.msra.mxu0 0.0
        %365 = vmatprep.subr.mxu0 0.0
        %366 = vmatpush1.xpose.msra.mxu0 0.0
        %367 = vmatprep.subr.mxu0 0.0
        %368 = vmatpush1.xpose.msra.mxu0 0.0
        %369 = vmatprep.subr.mxu0 0.0
        %370 = vmatpush1.xpose.msra.mxu0 0.0
        %371 = vmatprep.subr.mxu0 0.0
        %372 = vmatpush1.xpose.msra.mxu0 0.0
        %373 = vmatprep.subr.mxu0 0.0
        %374 = vmatpush1.xpose.msra.mxu0 0.0
        %375 = vmatprep.subr.mxu0 0.0
        %376 = vmatpush1.xpose.msra.mxu0 0.0
        %377 = vmatprep.subr.mxu0 0.0
        %378 = vmatpush1.xpose.msra.mxu0 0.0
        %379 = vmatprep.subr.mxu0 0.0
        %380 = vmatpush1.xpose.msra.mxu0 0.0
        %381 = vmatprep.subr.mxu0 0.0
        %382 = vmatpush1.xpose.msra.mxu0 0.0
        %383 = vmatprep.subr.mxu0 0.0
        %384 = vmatpush1.xpose.msra.mxu0 0.0
        %385 = vmatprep.subr.mxu0 0.0
        %386 = vmatpush1.xpose.msra.mxu0 0.0
        %387 = vmatprep.subr.mxu0 0.0
        %388 = vmatpush1.xpose.msra.mxu0 0.0
        %389 = vmatprep.subr.mxu0 0.0
        %390 = vmatpush1.xpose.msra.mxu0 0.0
        %391 = vmatprep.subr.mxu0 0.0
        %392 = vmatpush1.xpose.msra.mxu0 0.0
        %393 = vmatprep.subr.mxu0 0.0
        %394 = vmatpush1.xpose.msra.mxu0 0.0
        %395 = vmatprep.subr.mxu0 0.0
        %396 = vmatpush1.xpose.msra.mxu0 0.0
        %397 = vmatprep.subr.mxu0 0.0
        %398 = vmatpush1.xpose.msra.mxu0 0.0
        %399 = vmatprep.subr.mxu0 0.0
        %400 = vmatpush1.xpose.msra.mxu0 0.0
        %401 = vmatprep.subr.mxu0 0.0
        %402 = vmatpush1.xpose.msra.mxu0 0.0
        %403 = vmatprep.subr.mxu0 0.0
        %404 = vmatpush1.xpose.msra.mxu0 0.0
        %405 = vmatprep.subr.mxu0 0.0
        %406 = vmatpush1.xpose.msra.mxu0 0.0
        %407 = vmatprep.subr.mxu0 0.0
        %408 = vmatpush1.xpose.msra.mxu0 0.0
        %409 = vmatprep.subr.mxu0 0.0
        %410 = vmatpush1.xpose.msra.mxu0 0.0
        %411 = vmatprep.subr.mxu0 0.0
        %412 = vmatpush1.xpose.msra.mxu0 0.0
        %413 = vmatprep.subr.mxu0 0.0
        %414 = vmatpush1.xpose.msra.mxu0 0.0
        %415 = vmatprep.subr.mxu0 0.0
        %416 = vmatpush1.xpose.msra.mxu0 0.0
        %417 = vmatprep.mubr.f32.mxu0 0.0
        %418 = vmatmul.mubr.f32.gmra.mrb[0].mxu0 %v349
        %v419 = vpop.f32.mrb[0].mxu0
        %v420 = vadd.f32 0.0, %v419
        %v421 = vpop.f32.mrb[0].mxu0
        %422 = vdwg.mxu0
        %v423 = vsel %vm348, %v420, -inf
        %424 = vmax.xlane.f32.xlu0 %v423
        %v425 = vpop.xlane.xlu0 %424
        %v426 = vsub.f32 %v420, %v425
        %v427 = vmul.f32 %v426, 1.442695
        %v428 = vpow.pop %v427
        %v429 = vsel %vm348, %v428, 0.0
        %430 = vadd.xlane.f32.xlu0 %v429
        %v431 = vpop.xlane.xlu0 %430
        %v432 = vrcp.pop %v431
        %v433 = vmul.f32 %v428, %v432
        %434 = vst.msk [vmem:[%s253] sm:$0xff] %vm348, %v433
        %435 = vrot.lane.b32.xlu0 %v341, 64
        %v436 = vpop.permute.xlu0 %435
        %v439 = vsel %vm348, %v433, 0
        %441 = vmatprep.subr.mxu0 0.0
        %442 = vmatpush1.msra.mxu0 %v436
        %443 = vmatprep.subr.mxu0 0.0
        %444 = vmatpush1.msra.mxu0 0.0
        %445 = vmatprep.subr.mxu0 0.0
        %446 = vmatpush1.msra.mxu0 0.0
        %447 = vmatprep.subr.mxu0 0.0
        %448 = vmatpush1.msra.mxu0 0.0
        %449 = vmatprep.subr.mxu0 0.0
        %450 = vmatpush1.msra.mxu0 0.0
        %451 = vmatprep.subr.mxu0 0.0
        %452 = vmatpush1.msra.mxu0 0.0
        %453 = vmatprep.subr.mxu0 0.0
        %454 = vmatpush1.msra.mxu0 0.0
        %455 = vmatprep.subr.mxu0 0.0
        %456 = vmatpush1.msra.mxu0 0.0
        %457 = vmatprep.subr.mxu0 0.0
        %458 = vmatpush1.msra.mxu0 0.0
        %459 = vmatprep.subr.mxu0 0.0
        %460 = vmatpush1.msra.mxu0 0.0
        %461 = vmatprep.subr.mxu0 0.0
        %462 = vmatpush1.msra.mxu0 0.0
        %463 = vmatprep.subr.mxu0 0.0
        %464 = vmatpush1.msra.mxu0 0.0
        %465 = vmatprep.subr.mxu0 0.0
        %466 = vmatpush1.msra.mxu0 0.0
        %467 = vmatprep.subr.mxu0 0.0
        %468 = vmatpush1.msra.mxu0 0.0
        %469 = vmatprep.subr.mxu0 0.0
        %470 = vmatpush1.msra.mxu0 0.0
        %471 = vmatprep.subr.mxu0 0.0
        %472 = vmatpush1.msra.mxu0 0.0
        %473 = vmatprep.subr.mxu0 0.0
        %474 = vmatpush1.msra.mxu0 0.0
        %475 = vmatprep.subr.mxu0 0.0
        %476 = vmatpush1.msra.mxu0 0.0
        %477 = vmatprep.subr.mxu0 0.0
        %478 = vmatpush1.msra.mxu0 0.0
        %479 = vmatprep.subr.mxu0 0.0
        %480 = vmatpush1.msra.mxu0 0.0
        %481 = vmatprep.subr.mxu0 0.0
        %482 = vmatpush1.msra.mxu0 0.0
        %483 = vmatprep.subr.mxu0 0.0
        %484 = vmatpush1.msra.mxu0 0.0
        %485 = vmatprep.subr.mxu0 0.0
        %486 = vmatpush1.msra.mxu0 0.0
        %487 = vmatprep.subr.mxu0 0.0
        %488 = vmatpush1.msra.mxu0 0.0
        %489 = vmatprep.subr.mxu0 0.0
        %490 = vmatpush1.msra.mxu0 0.0
        %491 = vmatprep.subr.mxu0 0.0
        %492 = vmatpush1.msra.mxu0 0.0
        %493 = vmatprep.subr.mxu0 0.0
        %494 = vmatpush1.msra.mxu0 0.0
        %495 = vmatprep.subr.mxu0 0.0
        %496 = vmatpush1.msra.mxu0 0.0
        %497 = vmatprep.subr.mxu0 0.0
        %498 = vmatpush1.msra.mxu0 0.0
        %499 = vmatprep.subr.mxu0 0.0
        %500 = vmatpush1.msra.mxu0 0.0
        %501 = vmatprep.subr.mxu0 0.0
        %502 = vmatpush1.msra.mxu0 0.0
        %503 = vmatprep.subr.mxu0 0.0
        %504 = vmatpush1.msra.mxu0 0.0
        %505 = vmatprep.mubr.f32.mxu0 0.0
        %506 = vmatmul.mubr.f32.gmra.mrb[0].mxu0 %v439
        %v507 = vpop.f32.mrb[0].mxu0
        %v508 = vadd.f32 0.0, %v507
        %v509 = vpop.f32.mrb[0].mxu0
        %510 = vdwg.mxu0
        %v511 = vld [vmem:[%s2] sm:$0xff]
        %v512 = vld [vmem:[#allocation2] sm:$0xff]
        %v514 = vsel %vm348, %v508, 0
        %516 = vmatprep.subr.mxu0 0.0
        %517 = vmatpush1.msra.mxu0 %v511
        %518 = vmatprep.subr.mxu0 0.0
        %519 = vmatpush1.msra.mxu0 0.0
        %520 = vmatprep.subr.mxu0 0.0
        %521 = vmatpush1.msra.mxu0 0.0
        %522 = vmatprep.subr.mxu0 0.0
        %523 = vmatpush1.msra.mxu0 0.0
        %524 = vmatprep.subr.mxu0 0.0
        %525 = vmatpush1.msra.mxu0 0.0
        %526 = vmatprep.subr.mxu0 0.0
        %527 = vmatpush1.msra.mxu0 0.0
        %528 = vmatprep.subr.mxu0 0.0
        %529 = vmatpush1.msra.mxu0 0.0
        %530 = vmatprep.subr.mxu0 0.0
        %531 = vmatpush1.msra.mxu0 0.0
        %532 = vmatprep.subr.mxu0 0.0
        %533 = vmatpush1.msra.mxu0 0.0
        %534 = vmatprep.subr.mxu0 0.0
        %535 = vmatpush1.msra.mxu0 0.0
        %536 = vmatprep.subr.mxu0 0.0
        %537 = vmatpush1.msra.mxu0 0.0
        %538 = vmatprep.subr.mxu0 0.0
        %539 = vmatpush1.msra.mxu0 0.0
        %540 = vmatprep.subr.mxu0 0.0
        %541 = vmatpush1.msra.mxu0 0.0
        %542 = vmatprep.subr.mxu0 0.0
        %543 = vmatpush1.msra.mxu0 0.0
        %544 = vmatprep.subr.mxu0 0.0
        %545 = vmatpush1.msra.mxu0 0.0
        %546 = vmatprep.subr.mxu0 0.0
        %547 = vmatpush1.msra.mxu0 0.0
        %548 = vmatprep.subr.mxu0 0.0
        %549 = vmatpush1.msra.mxu0 0.0
        %550 = vmatprep.subr.mxu0 0.0
        %551 = vmatpush1.msra.mxu0 0.0
        %552 = vmatprep.subr.mxu0 0.0
        %553 = vmatpush1.msra.mxu0 0.0
        %554 = vmatprep.subr.mxu0 0.0
        %555 = vmatpush1.msra.mxu0 0.0
        %556 = vmatprep.subr.mxu0 0.0
        %557 = vmatpush1.msra.mxu0 0.0
        %558 = vmatprep.subr.mxu0 0.0
        %559 = vmatpush1.msra.mxu0 0.0
        %560 = vmatprep.subr.mxu0 0.0
        %561 = vmatpush1.msra.mxu0 0.0
        %562 = vmatprep.subr.mxu0 0.0
        %563 = vmatpush1.msra.mxu0 0.0
        %564 = vmatprep.subr.mxu0 0.0
        %565 = vmatpush1.msra.mxu0 0.0
        %566 = vmatprep.subr.mxu0 0.0
        %567 = vmatpush1.msra.mxu0 0.0
        %568 = vmatprep.subr.mxu0 0.0
        %569 = vmatpush1.msra.mxu0 0.0
        %570 = vmatprep.subr.mxu0 0.0
        %571 = vmatpush1.msra.mxu0 0.0
        %572 = vmatprep.subr.mxu0 0.0
        %573 = vmatpush1.msra.mxu0 0.0
        %574 = vmatprep.subr.mxu0 0.0
        %575 = vmatpush1.msra.mxu0 0.0
        %576 = vmatprep.subr.mxu0 0.0
        %577 = vmatpush1.msra.mxu0 0.0
        %578 = vmatprep.subr.mxu0 0.0
        %579 = vmatpush1.msra.mxu0 0.0
        %580 = vmatprep.mubr.f32.mxu0 0.0
        %581 = vmatmul.mubr.f32.gmra.mrb[0].mxu0 %v514
        %v582 = vpop.f32.mrb[0].mxu0
        %v583 = vadd.f32 0.0, %v582
        %v584 = vpop.f32.mrb[0].mxu0
        %585 = vdwg.mxu0
        %v586 = vadd.f32 %v512, %v583
        %587 = vst.msk [vmem:[#allocation2] sm:$0xff] %vm270, %v586
        %588 = vrot.lane.b32.xlu0 %v341, 120
        %v589 = vpop.permute.xlu0 %588
        %590 = vrot.lane.b32.xlu0 %v341, 88
        %v591 = vpop.permute.xlu0 %590
        %v592 = vsel %vm348, %v589, 0
        %v594 = vsel %vm348, %v591, 0
        %596 = vmatprep.subr.mxu0 0.0
        %597 = vmatpush1.xpose.msra.mxu0 %v594
        %598 = vmatprep.subr.mxu0 0.0
        %599 = vmatpush1.xpose.msra.mxu0 0.0
        %600 = vmatprep.subr.mxu0 0.0
        %601 = vmatpush1.xpose.msra.mxu0 0.0
        %602 = vmatprep.subr.mxu0 0.0
        %603 = vmatpush1.xpose.msra.mxu0 0.0
        %604 = vmatprep.subr.mxu0 0.0
        %605 = vmatpush1.xpose.msra.mxu0 0.0
        %606 = vmatprep.subr.mxu0 0.0
        %607 = vmatpush1.xpose.msra.mxu0 0.0
        %608 = vmatprep.subr.mxu0 0.0
        %609 = vmatpush1.xpose.msra.mxu0 0.0
        %610 = vmatprep.subr.mxu0 0.0
        %611 = vmatpush1.xpose.msra.mxu0 0.0
        %612 = vmatprep.subr.mxu0 0.0
        %613 = vmatpush1.xpose.msra.mxu0 0.0
        %614 = vmatprep.subr.mxu0 0.0
        %615 = vmatpush1.xpose.msra.mxu0 0.0
        %616 = vmatprep.subr.mxu0 0.0
        %617 = vmatpush1.xpose.msra.mxu0 0.0
        %618 = vmatprep.subr.mxu0 0.0
        %619 = vmatpush1.xpose.msra.mxu0 0.0
        %620 = vmatprep.subr.mxu0 0.0
        %621 = vmatpush1.xpose.msra.mxu0 0.0
        %622 = vmatprep.subr.mxu0 0.0
        %623 = vmatpush1.xpose.msra.mxu0 0.0
        %624 = vmatprep.subr.mxu0 0.0
        %625 = vmatpush1.xpose.msra.mxu0 0.0
        %626 = vmatprep.subr.mxu0 0.0
        %627 = vmatpush1.xpose.msra.mxu0 0.0
        %628 = vmatprep.subr.mxu0 0.0
        %629 = vmatpush1.xpose.msra.mxu0 0.0
        %630 = vmatprep.subr.mxu0 0.0
        %631 = vmatpush1.xpose.msra.mxu0 0.0
        %632 = vmatprep.subr.mxu0 0.0
        %633 = vmatpush1.xpose.msra.mxu0 0.0
        %634 = vmatprep.subr.mxu0 0.0
        %635 = vmatpush1.xpose.msra.mxu0 0.0
        %636 = vmatprep.subr.mxu0 0.0
        %637 = vmatpush1.xpose.msra.mxu0 0.0
        %638 = vmatprep.subr.mxu0 0.0
        %639 = vmatpush1.xpose.msra.mxu0 0.0
        %640 = vmatprep.subr.mxu0 0.0
        %641 = vmatpush1.xpose.msra.mxu0 0.0
        %642 = vmatprep.subr.mxu0 0.0
        %643 = vmatpush1.xpose.msra.mxu0 0.0
        %644 = vmatprep.subr.mxu0 0.0
        %645 = vmatpush1.xpose.msra.mxu0 0.0
        %646 = vmatprep.subr.mxu0 0.0
        %647 = vmatpush1.xpose.msra.mxu0 0.0
        %648 = vmatprep.subr.mxu0 0.0
        %649 = vmatpush1.xpose.msra.mxu0 0.0
        %650 = vmatprep.subr.mxu0 0.0
        %651 = vmatpush1.xpose.msra.mxu0 0.0
        %652 = vmatprep.subr.mxu0 0.0
        %653 = vmatpush1.xpose.msra.mxu0 0.0
        %654 = vmatprep.subr.mxu0 0.0
        %655 = vmatpush1.xpose.msra.mxu0 0.0
        %656 = vmatprep.subr.mxu0 0.0
        %657 = vmatpush1.xpose.msra.mxu0 0.0
        %658 = vmatprep.subr.mxu0 0.0
        %659 = vmatpush1.xpose.msra.mxu0 0.0
        %660 = vmatprep.mubr.f32.mxu0 0.0
        %661 = vmatmul.mubr.f32.gmra.mrb[0].mxu0 %v592
        %v662 = vpop.f32.mrb[0].mxu0
        %v663 = vadd.f32 0.0, %v662
        %v664 = vpop.f32.mrb[0].mxu0
        %665 = vdwg.mxu0
        %v666 = vsel %vm348, %v663, -inf
        %667 = vmax.xlane.f32.xlu0 %v666
        %v668 = vpop.xlane.xlu0 %667
        %v669 = vsub.f32 %v663, %v668
        %v670 = vmul.f32 %v669, 1.442695
        %v671 = vpow.pop %v670
        %v672 = vsel %vm348, %v671, 0.0
        %673 = vadd.xlane.f32.xlu0 %v672
        %v674 = vpop.xlane.xlu0 %673
        %v675 = vrcp.pop %v674
        %v676 = vmul.f32 %v671, %v675
        %s677 = scalar_lea.vmem %s253, 8 [#allocation5]
        %678 = vst.msk [vmem:[%s677] sm:$0xff] %vm348, %v676
        %679 = vrot.lane.b32.xlu0 %v341, 56
        %v680 = vpop.permute.xlu0 %679
        %v683 = vsel %vm348, %v676, 0
        %685 = vmatprep.subr.mxu0 0.0
        %686 = vmatpush1.msra.mxu0 %v680
        %687 = vmatprep.subr.mxu0 0.0
        %688 = vmatpush1.msra.mxu0 0.0
        %689 = vmatprep.subr.mxu0 0.0
        %690 = vmatpush1.msra.mxu0 0.0
        %691 = vmatprep.subr.mxu0 0.0
        %692 = vmatpush1.msra.mxu0 0.0
        %693 = vmatprep.subr.mxu0 0.0
        %694 = vmatpush1.msra.mxu0 0.0
        %695 = vmatprep.subr.mxu0 0.0
        %696 = vmatpush1.msra.mxu0 0.0
        %697 = vmatprep.subr.mxu0 0.0
        %698 = vmatpush1.msra.mxu0 0.0
        %699 = vmatprep.subr.mxu0 0.0
        %700 = vmatpush1.msra.mxu0 0.0
        %701 = vmatprep.subr.mxu0 0.0
        %702 = vmatpush1.msra.mxu0 0.0
        %703 = vmatprep.subr.mxu0 0.0
        %704 = vmatpush1.msra.mxu0 0.0
        %705 = vmatprep.subr.mxu0 0.0
        %706 = vmatpush1.msra.mxu0 0.0
        %707 = vmatprep.subr.mxu0 0.0
        %708 = vmatpush1.msra.mxu0 0.0
        %709 = vmatprep.subr.mxu0 0.0
        %710 = vmatpush1.msra.mxu0 0.0
        %711 = vmatprep.subr.mxu0 0.0
        %712 = vmatpush1.msra.mxu0 0.0
        %713 = vmatprep.subr.mxu0 0.0
        %714 = vmatpush1.msra.mxu0 0.0
        %715 = vmatprep.subr.mxu0 0.0
        %716 = vmatpush1.msra.mxu0 0.0
        %717 = vmatprep.subr.mxu0 0.0
        %718 = vmatpush1.msra.mxu0 0.0
        %719 = vmatprep.subr.mxu0 0.0
        %720 = vmatpush1.msra.mxu0 0.0
        %721 = vmatprep.subr.mxu0 0.0
        %722 = vmatpush1.msra.mxu0 0.0
        %723 = vmatprep.subr.mxu0 0.0
        %724 = vmatpush1.msra.mxu0 0.0
        %725 = vmatprep.subr.mxu0 0.0
        %726 = vmatpush1.msra.mxu0 0.0
        %727 = vmatprep.subr.mxu0 0.0
        %728 = vmatpush1.msra.mxu0 0.0
        %729 = vmatprep.subr.mxu0 0.0
        %730 = vmatpush1.msra.mxu0 0.0
        %731 = vmatprep.subr.mxu0 0.0
        %732 = vmatpush1.msra.mxu0 0.0
        %733 = vmatprep.subr.mxu0 0.0
        %734 = vmatpush1.msra.mxu0 0.0
        %735 = vmatprep.subr.mxu0 0.0
        %736 = vmatpush1.msra.mxu0 0.0
        %737 = vmatprep.subr.mxu0 0.0
        %738 = vmatpush1.msra.mxu0 0.0
        %739 = vmatprep.subr.mxu0 0.0
        %740 = vmatpush1.msra.mxu0 0.0
        %741 = vmatprep.subr.mxu0 0.0
        %742 = vmatpush1.msra.mxu0 0.0
        %743 = vmatprep.subr.mxu0 0.0
        %744 = vmatpush1.msra.mxu0 0.0
        %745 = vmatprep.subr.mxu0 0.0
        %746 = vmatpush1.msra.mxu0 0.0
        %747 = vmatprep.subr.mxu0 0.0
        %748 = vmatpush1.msra.mxu0 0.0
        %749 = vmatprep.mubr.f32.mxu0 0.0
        %750 = vmatmul.mubr.f32.gmra.mrb[0].mxu0 %v683
        %v751 = vpop.f32.mrb[0].mxu0
        %v752 = vadd.f32 0.0, %v751
        %v753 = vpop.f32.mrb[0].mxu0
        %754 = vdwg.mxu0
        %v755 = vld [vmem:[%s2 + $0x8] sm:$0xff]
        %v756 = vld [vmem:[#allocation2] sm:$0xff]
        %v758 = vsel %vm348, %v752, 0
        %760 = vmatprep.subr.mxu0 0.0
        %761 = vmatpush1.msra.mxu0 %v755
        %762 = vmatprep.subr.mxu0 0.0
        %763 = vmatpush1.msra.mxu0 0.0
        %764 = vmatprep.subr.mxu0 0.0
        %765 = vmatpush1.msra.mxu0 0.0
        %766 = vmatprep.subr.mxu0 0.0
        %767 = vmatpush1.msra.mxu0 0.0
        %768 = vmatprep.subr.mxu0 0.0
        %769 = vmatpush1.msra.mxu0 0.0
        %770 = vmatprep.subr.mxu0 0.0
        %771 = vmatpush1.msra.mxu0 0.0
        %772 = vmatprep.subr.mxu0 0.0
        %773 = vmatpush1.msra.mxu0 0.0
        %774 = vmatprep.subr.mxu0 0.0
        %775 = vmatpush1.msra.mxu0 0.0
        %776 = vmatprep.subr.mxu0 0.0
        %777 = vmatpush1.msra.mxu0 0.0
        %778 = vmatprep.subr.mxu0 0.0
        %779 = vmatpush1.msra.mxu0 0.0
        %780 = vmatprep.subr.mxu0 0.0
        %781 = vmatpush1.msra.mxu0 0.0
        %782 = vmatprep.subr.mxu0 0.0
        %783 = vmatpush1.msra.mxu0 0.0
        %784 = vmatprep.subr.mxu0 0.0
        %785 = vmatpush1.msra.mxu0 0.0
        %786 = vmatprep.subr.mxu0 0.0
        %787 = vmatpush1.msra.mxu0 0.0
        %788 = vmatprep.subr.mxu0 0.0
        %789 = vmatpush1.msra.mxu0 0.0
        %790 = vmatprep.subr.mxu0 0.0
        %791 = vmatpush1.msra.mxu0 0.0
        %792 = vmatprep.subr.mxu0 0.0
        %793 = vmatpush1.msra.mxu0 0.0
        %794 = vmatprep.subr.mxu0 0.0
        %795 = vmatpush1.msra.mxu0 0.0
        %796 = vmatprep.subr.mxu0 0.0
        %797 = vmatpush1.msra.mxu0 0.0
        %798 = vmatprep.subr.mxu0 0.0
        %799 = vmatpush1.msra.mxu0 0.0
        %800 = vmatprep.subr.mxu0 0.0
        %801 = vmatpush1.msra.mxu0 0.0
        %802 = vmatprep.subr.mxu0 0.0
        %803 = vmatpush1.msra.mxu0 0.0
        %804 = vmatprep.subr.mxu0 0.0
        %805 = vmatpush1.msra.mxu0 0.0
        %806 = vmatprep.subr.mxu0 0.0
        %807 = vmatpush1.msra.mxu0 0.0
        %808 = vmatprep.subr.mxu0 0.0
        %809 = vmatpush1.msra.mxu0 0.0
        %810 = vmatprep.subr.mxu0 0.0
        %811 = vmatpush1.msra.mxu0 0.0
        %812 = vmatprep.subr.mxu0 0.0
        %813 = vmatpush1.msra.mxu0 0.0
        %814 = vmatprep.subr.mxu0 0.0
        %815 = vmatpush1.msra.mxu0 0.0
        %816 = vmatprep.subr.mxu0 0.0
        %817 = vmatpush1.msra.mxu0 0.0
        %818 = vmatprep.subr.mxu0 0.0
        %819 = vmatpush1.msra.mxu0 0.0
        %820 = vmatprep.subr.mxu0 0.0
        %821 = vmatpush1.msra.mxu0 0.0
        %822 = vmatprep.subr.mxu0 0.0
        %823 = vmatpush1.msra.mxu0 0.0
        %824 = vmatprep.mubr.f32.mxu0 0.0
        %825 = vmatmul.mubr.f32.gmra.mrb[0].mxu0 %v758
        %v826 = vpop.f32.mrb[0].mxu0
        %v827 = vadd.f32 0.0, %v826
        %v828 = vpop.f32.mrb[0].mxu0
        %829 = vdwg.mxu0
        %v830 = vadd.f32 %v756, %v827
        %831 = vst.msk [vmem:[#allocation2] sm:$0xff] %vm270, %v830
        %832 = vrot.lane.b32.xlu0 %v341, 112
        %v833 = vpop.permute.xlu0 %832
        %834 = vrot.lane.b32.xlu0 %v341, 80
        %v835 = vpop.permute.xlu0 %834
        %v836 = vsel %vm348, %v833, 0
        %v838 = vsel %vm348, %v835, 0
        %840 = vmatprep.subr.mxu0 0.0
        %841 = vmatpush1.xpose.msra.mxu0 %v838
        %842 = vmatprep.subr.mxu0 0.0
        %843 = vmatpush1.xpose.msra.mxu0 0.0
        %844 = vmatprep.subr.mxu0 0.0
        %845 = vmatpush1.xpose.msra.mxu0 0.0
        %846 = vmatprep.subr.mxu0 0.0
        %847 = vmatpush1.xpose.msra.mxu0 0.0
        %848 = vmatprep.subr.mxu0 0.0
        %849 = vmatpush1.xpose.msra.mxu0 0.0
        %850 = vmatprep.subr.mxu0 0.0
        %851 = vmatpush1.xpose.msra.mxu0 0.0
        %852 = vmatprep.subr.mxu0 0.0
        %853 = vmatpush1.xpose.msra.mxu0 0.0
        %854 = vmatprep.subr.mxu0 0.0
        %855 = vmatpush1.xpose.msra.mxu0 0.0
        %856 = vmatprep.subr.mxu0 0.0
        %857 = vmatpush1.xpose.msra.mxu0 0.0
        %858 = vmatprep.subr.mxu0 0.0
        %859 = vmatpush1.xpose.msra.mxu0 0.0
        %860 = vmatprep.subr.mxu0 0.0
        %861 = vmatpush1.xpose.msra.mxu0 0.0
        %862 = vmatprep.subr.mxu0 0.0
        %863 = vmatpush1.xpose.msra.mxu0 0.0
        %864 = vmatprep.subr.mxu0 0.0
        %865 = vmatpush1.xpose.msra.mxu0 0.0
        %866 = vmatprep.subr.mxu0 0.0
        %867 = vmatpush1.xpose.msra.mxu0 0.0
        %868 = vmatprep.subr.mxu0 0.0
        %869 = vmatpush1.xpose.msra.mxu0 0.0
        %870 = vmatprep.subr.mxu0 0.0
        %871 = vmatpush1.xpose.msra.mxu0 0.0
        %872 = vmatprep.subr.mxu0 0.0
        %873 = vmatpush1.xpose.msra.mxu0 0.0
        %874 = vmatprep.subr.mxu0 0.0
        %875 = vmatpush1.xpose.msra.mxu0 0.0
        %876 = vmatprep.subr.mxu0 0.0
        %877 = vmatpush1.xpose.msra.mxu0 0.0
        %878 = vmatprep.subr.mxu0 0.0
        %879 = vmatpush1.xpose.msra.mxu0 0.0
        %880 = vmatprep.subr.mxu0 0.0
        %881 = vmatpush1.xpose.msra.mxu0 0.0
        %882 = vmatprep.subr.mxu0 0.0
        %883 = vmatpush1.xpose.msra.mxu0 0.0
        %884 = vmatprep.subr.mxu0 0.0
        %885 = vmatpush1.xpose.msra.mxu0 0.0
        %886 = vmatprep.subr.mxu0 0.0
        %887 = vmatpush1.xpose.msra.mxu0 0.0
        %888 = vmatprep.subr.mxu0 0.0
        %889 = vmatpush1.xpose.msra.mxu0 0.0
        %890 = vmatprep.subr.mxu0 0.0
        %891 = vmatpush1.xpose.msra.mxu0 0.0
        %892 = vmatprep.subr.mxu0 0.0
        %893 = vmatpush1.xpose.msra.mxu0 0.0
        %894 = vmatprep.subr.mxu0 0.0
        %895 = vmatpush1.xpose.msra.mxu0 0.0
        %896 = vmatprep.subr.mxu0 0.0
        %897 = vmatpush1.xpose.msra.mxu0 0.0
        %898 = vmatprep.subr.mxu0 0.0
        %899 = vmatpush1.xpose.msra.mxu0 0.0
        %900 = vmatprep.subr.mxu0 0.0
        %901 = vmatpush1.xpose.msra.mxu0 0.0
        %902 = vmatprep.subr.mxu0 0.0
        %903 = vmatpush1.xpose.msra.mxu0 0.0
        %904 = vmatprep.mubr.f32.mxu0 0.0
        %905 = vmatmul.mubr.f32.gmra.mrb[0].mxu0 %v836
        %v906 = vpop.f32.mrb[0].mxu0
        %v907 = vadd.f32 0.0, %v906
        %v908 = vpop.f32.mrb[0].mxu0
        %909 = vdwg.mxu0
        %v910 = vsel %vm348, %v907, -inf
        %911 = vmax.xlane.f32.xlu0 %v910
        %v912 = vpop.xlane.xlu0 %911
        %v913 = vsub.f32 %v907, %v912
        %v914 = vmul.f32 %v913, 1.442695
        %v915 = vpow.pop %v914
        %v916 = vsel %vm348, %v915, 0.0
        %917 = vadd.xlane.f32.xlu0 %v916
        %v918 = vpop.xlane.xlu0 %917
        %v919 = vrcp.pop %v918
        %v920 = vmul.f32 %v915, %v919
        %s921 = scalar_lea.vmem %s253, 16 [#allocation5]
        %922 = vst.msk [vmem:[%s921] sm:$0xff] %vm348, %v920
        %923 = vrot.lane.b32.xlu0 %v341, 48
        %v924 = vpop.permute.xlu0 %923
        %v927 = vsel %vm348, %v920, 0
        %929 = vmatprep.subr.mxu0 0.0
        %930 = vmatpush1.msra.mxu0 %v924
        %931 = vmatprep.subr.mxu0 0.0
        %932 = vmatpush1.msra.mxu0 0.0
        %933 = vmatprep.subr.mxu0 0.0
        %934 = vmatpush1.msra.mxu0 0.0
        %935 = vmatprep.subr.mxu0 0.0
        %936 = vmatpush1.msra.mxu0 0.0
        %937 = vmatprep.subr.mxu0 0.0
        %938 = vmatpush1.msra.mxu0 0.0
        %939 = vmatprep.subr.mxu0 0.0
        %940 = vmatpush1.msra.mxu0 0.0
        %941 = vmatprep.subr.mxu0 0.0
        %942 = vmatpush1.msra.mxu0 0.0
        %943 = vmatprep.subr.mxu0 0.0
        %944 = vmatpush1.msra.mxu0 0.0
        %945 = vmatprep.subr.mxu0 0.0
        %946 = vmatpush1.msra.mxu0 0.0
        %947 = vmatprep.subr.mxu0 0.0
        %948 = vmatpush1.msra.mxu0 0.0
        %949 = vmatprep.subr.mxu0 0.0
        %950 = vmatpush1.msra.mxu0 0.0
        %951 = vmatprep.subr.mxu0 0.0
        %952 = vmatpush1.msra.mxu0 0.0
        %953 = vmatprep.subr.mxu0 0.0
        %954 = vmatpush1.msra.mxu0 0.0
        %955 = vmatprep.subr.mxu0 0.0
        %956 = vmatpush1.msra.mxu0 0.0
        %957 = vmatprep.subr.mxu0 0.0
        %958 = vmatpush1.msra.mxu0 0.0
        %959 = vmatprep.subr.mxu0 0.0
        %960 = vmatpush1.msra.mxu0 0.0
        %961 = vmatprep.subr.mxu0 0.0
        %962 = vmatpush1.msra.mxu0 0.0
        %963 = vmatprep.subr.mxu0 0.0
        %964 = vmatpush1.msra.mxu0 0.0
        %965 = vmatprep.subr.mxu0 0.0
        %966 = vmatpush1.msra.mxu0 0.0
        %967 = vmatprep.subr.mxu0 0.0
        %968 = vmatpush1.msra.mxu0 0.0
        %969 = vmatprep.subr.mxu0 0.0
        %970 = vmatpush1.msra.mxu0 0.0
        %971 = vmatprep.subr.mxu0 0.0
        %972 = vmatpush1.msra.mxu0 0.0
        %973 = vmatprep.subr.mxu0 0.0
        %974 = vmatpush1.msra.mxu0 0.0
        %975 = vmatprep.subr.mxu0 0.0
        %976 = vmatpush1.msra.mxu0 0.0
        %977 = vmatprep.subr.mxu0 0.0
        %978 = vmatpush1.msra.mxu0 0.0
        %979 = vmatprep.subr.mxu0 0.0
        %980 = vmatpush1.msra.mxu0 0.0
        %981 = vmatprep.subr.mxu0 0.0
        %982 = vmatpush1.msra.mxu0 0.0
        %983 = vmatprep.subr.mxu0 0.0
        %984 = vmatpush1.msra.mxu0 0.0
        %985 = vmatprep.subr.mxu0 0.0
        %986 = vmatpush1.msra.mxu0 0.0
        %987 = vmatprep.subr.mxu0 0.0
        %988 = vmatpush1.msra.mxu0 0.0
        %989 = vmatprep.subr.mxu0 0.0
        %990 = vmatpush1.msra.mxu0 0.0
        %991 = vmatprep.subr.mxu0 0.0
        %992 = vmatpush1.msra.mxu0 0.0
        %993 = vmatprep.mubr.f32.mxu0 0.0
        %994 = vmatmul.mubr.f32.gmra.mrb[0].mxu0 %v927
        %v995 = vpop.f32.mrb[0].mxu0
        %v996 = vadd.f32 0.0, %v995
        %v997 = vpop.f32.mrb[0].mxu0
        %998 = vdwg.mxu0
        %v999 = vld [vmem:[%s2 + $0x10] sm:$0xff]
        %v1000 = vld [vmem:[#allocation2] sm:$0xff]
        %v1002 = vsel %vm348, %v996, 0
        %1004 = vmatprep.subr.mxu0 0.0
        %1005 = vmatpush1.msra.mxu0 %v999
        %1006 = vmatprep.subr.mxu0 0.0
        %1007 = vmatpush1.msra.mxu0 0.0
        %1008 = vmatprep.subr.mxu0 0.0
        %1009 = vmatpush1.msra.mxu0 0.0
        %1010 = vmatprep.subr.mxu0 0.0
        %1011 = vmatpush1.msra.mxu0 0.0
        %1012 = vmatprep.subr.mxu0 0.0
        %1013 = vmatpush1.msra.mxu0 0.0
        %1014 = vmatprep.subr.mxu0 0.0
        %1015 = vmatpush1.msra.mxu0 0.0
        %1016 = vmatprep.subr.mxu0 0.0
        %1017 = vmatpush1.msra.mxu0 0.0
        %1018 = vmatprep.subr.mxu0 0.0
        %1019 = vmatpush1.msra.mxu0 0.0
        %1020 = vmatprep.subr.mxu0 0.0
        %1021 = vmatpush1.msra.mxu0 0.0
        %1022 = vmatprep.subr.mxu0 0.0
        %1023 = vmatpush1.msra.mxu0 0.0
        %1024 = vmatprep.subr.mxu0 0.0
        %1025 = vmatpush1.msra.mxu0 0.0
        %1026 = vmatprep.subr.mxu0 0.0
        %1027 = vmatpush1.msra.mxu0 0.0
        %1028 = vmatprep.subr.mxu0 0.0
        %1029 = vmatpush1.msra.mxu0 0.0
        %1030 = vmatprep.subr.mxu0 0.0
        %1031 = vmatpush1.msra.mxu0 0.0
        %1032 = vmatprep.subr.mxu0 0.0
        %1033 = vmatpush1.msra.mxu0 0.0
        %1034 = vmatprep.subr.mxu0 0.0
        %1035 = vmatpush1.msra.mxu0 0.0
        %1036 = vmatprep.subr.mxu0 0.0
        %1037 = vmatpush1.msra.mxu0 0.0
        %1038 = vmatprep.subr.mxu0 0.0
        %1039 = vmatpush1.msra.mxu0 0.0
        %1040 = vmatprep.subr.mxu0 0.0
        %1041 = vmatpush1.msra.mxu0 0.0
        %1042 = vmatprep.subr.mxu0 0.0
        %1043 = vmatpush1.msra.mxu0 0.0
        %1044 = vmatprep.subr.mxu0 0.0
        %1045 = vmatpush1.msra.mxu0 0.0
        %1046 = vmatprep.subr.mxu0 0.0
        %1047 = vmatpush1.msra.mxu0 0.0
        %1048 = vmatprep.subr.mxu0 0.0
        %1049 = vmatpush1.msra.mxu0 0.0
        %1050 = vmatprep.subr.mxu0 0.0
        %1051 = vmatpush1.msra.mxu0 0.0
        %1052 = vmatprep.subr.mxu0 0.0
        %1053 = vmatpush1.msra.mxu0 0.0
        %1054 = vmatprep.subr.mxu0 0.0
        %1055 = vmatpush1.msra.mxu0 0.0
        %1056 = vmatprep.subr.mxu0 0.0
        %1057 = vmatpush1.msra.mxu0 0.0
        %1058 = vmatprep.subr.mxu0 0.0
        %1059 = vmatpush1.msra.mxu0 0.0
        %1060 = vmatprep.subr.mxu0 0.0
        %1061 = vmatpush1.msra.mxu0 0.0
        %1062 = vmatprep.subr.mxu0 0.0
        %1063 = vmatpush1.msra.mxu0 0.0
        %1064 = vmatprep.subr.mxu0 0.0
        %1065 = vmatpush1.msra.mxu0 0.0
        %1066 = vmatprep.subr.mxu0 0.0
        %1067 = vmatpush1.msra.mxu0 0.0
        %1068 = vmatprep.mubr.f32.mxu0 0.0
        %1069 = vmatmul.mubr.f32.gmra.mrb[0].mxu0 %v1002
        %v1070 = vpop.f32.mrb[0].mxu0
        %v1071 = vadd.f32 0.0, %v1070
        %v1072 = vpop.f32.mrb[0].mxu0
        %1073 = vdwg.mxu0
        %v1074 = vadd.f32 %v1000, %v1071
        %1075 = vst.msk [vmem:[#allocation2] sm:$0xff] %vm270, %v1074
        %1076 = vrot.lane.b32.xlu0 %v341, 104
        %v1077 = vpop.permute.xlu0 %1076
        %1078 = vrot.lane.b32.xlu0 %v341, 72
        %v1079 = vpop.permute.xlu0 %1078
        %v1080 = vsel %vm348, %v1077, 0
        %v1082 = vsel %vm348, %v1079, 0
        %1084 = vmatprep.subr.mxu0 0.0
        %1085 = vmatpush1.xpose.msra.mxu0 %v1082
        %1086 = vmatprep.subr.mxu0 0.0
        %1087 = vmatpush1.xpose.msra.mxu0 0.0
        %1088 = vmatprep.subr.mxu0 0.0
        %1089 = vmatpush1.xpose.msra.mxu0 0.0
        %1090 = vmatprep.subr.mxu0 0.0
        %1091 = vmatpush1.xpose.msra.mxu0 0.0
        %1092 = vmatprep.subr.mxu0 0.0
        %1093 = vmatpush1.xpose.msra.mxu0 0.0
        %1094 = vmatprep.subr.mxu0 0.0
        %1095 = vmatpush1.xpose.msra.mxu0 0.0
        %1096 = vmatprep.subr.mxu0 0.0
        %1097 = vmatpush1.xpose.msra.mxu0 0.0
        %1098 = vmatprep.subr.mxu0 0.0
        %1099 = vmatpush1.xpose.msra.mxu0 0.0
        %1100 = vmatprep.subr.mxu0 0.0
        %1101 = vmatpush1.xpose.msra.mxu0 0.0
        %1102 = vmatprep.subr.mxu0 0.0
        %1103 = vmatpush1.xpose.msra.mxu0 0.0
        %1104 = vmatprep.subr.mxu0 0.0
        %1105 = vmatpush1.xpose.msra.mxu0 0.0
        %1106 = vmatprep.subr.mxu0 0.0
        %1107 = vmatpush1.xpose.msra.mxu0 0.0
        %1108 = vmatprep.subr.mxu0 0.0
        %1109 = vmatpush1.xpose.msra.mxu0 0.0
        %1110 = vmatprep.subr.mxu0 0.0
        %1111 = vmatpush1.xpose.msra.mxu0 0.0
        %1112 = vmatprep.subr.mxu0 0.0
        %1113 = vmatpush1.xpose.msra.mxu0 0.0
        %1114 = vmatprep.subr.mxu0 0.0
        %1115 = vmatpush1.xpose.msra.mxu0 0.0
        %1116 = vmatprep.subr.mxu0 0.0
        %1117 = vmatpush1.xpose.msra.mxu0 0.0
        %1118 = vmatprep.subr.mxu0 0.0
        %1119 = vmatpush1.xpose.msra.mxu0 0.0
        %1120 = vmatprep.subr.mxu0 0.0
        %1121 = vmatpush1.xpose.msra.mxu0 0.0
        %1122 = vmatprep.subr.mxu0 0.0
        %1123 = vmatpush1.xpose.msra.mxu0 0.0
        %1124 = vmatprep.subr.mxu0 0.0
        %1125 = vmatpush1.xpose.msra.mxu0 0.0
        %1126 = vmatprep.subr.mxu0 0.0
        %1127 = vmatpush1.xpose.msra.mxu0 0.0
        %1128 = vmatprep.subr.mxu0 0.0
        %1129 = vmatpush1.xpose.msra.mxu0 0.0
        %1130 = vmatprep.subr.mxu0 0.0
        %1131 = vmatpush1.xpose.msra.mxu0 0.0
        %1132 = vmatprep.subr.mxu0 0.0
        %1133 = vmatpush1.xpose.msra.mxu0 0.0
        %1134 = vmatprep.subr.mxu0 0.0
        %1135 = vmatpush1.xpose.msra.mxu0 0.0
        %1136 = vmatprep.subr.mxu0 0.0
        %1137 = vmatpush1.xpose.msra.mxu0 0.0
        %1138 = vmatprep.subr.mxu0 0.0
        %1139 = vmatpush1.xpose.msra.mxu0 0.0
        %1140 = vmatprep.subr.mxu0 0.0
        %1141 = vmatpush1.xpose.msra.mxu0 0.0
        %1142 = vmatprep.subr.mxu0 0.0
        %1143 = vmatpush1.xpose.msra.mxu0 0.0
        %1144 = vmatprep.subr.mxu0 0.0
        %1145 = vmatpush1.xpose.msra.mxu0 0.0
        %1146 = vmatprep.subr.mxu0 0.0
        %1147 = vmatpush1.xpose.msra.mxu0 0.0
        %1148 = vmatprep.mubr.f32.mxu0 0.0
        %1149 = vmatmul.mubr.f32.gmra.mrb[0].mxu0 %v1080
        %v1150 = vpop.f32.mrb[0].mxu0
        %v1151 = vadd.f32 0.0, %v1150
        %v1152 = vpop.f32.mrb[0].mxu0
        %1153 = vdwg.mxu0
        %v1154 = vsel %vm348, %v1151, -inf
        %1155 = vmax.xlane.f32.xlu0 %v1154
        %v1156 = vpop.xlane.xlu0 %1155
        %v1157 = vsub.f32 %v1151, %v1156
        %v1158 = vmul.f32 %v1157, 1.442695
        %v1159 = vpow.pop %v1158
        %v1160 = vsel %vm348, %v1159, 0.0
        %1161 = vadd.xlane.f32.xlu0 %v1160
        %v1162 = vpop.xlane.xlu0 %1161
        %v1163 = vrcp.pop %v1162
        %v1164 = vmul.f32 %v1159, %v1163
        %s1165 = scalar_lea.vmem %s253, 24 [#allocation5]
        %1166 = vst.msk [vmem:[%s1165] sm:$0xff] %vm348, %v1164
        %1167 = vrot.lane.b32.xlu0 %v341, 40
        %v1168 = vpop.permute.xlu0 %1167
        %v1171 = vsel %vm348, %v1164, 0
        %1173 = vmatprep.subr.mxu0 0.0
        %1174 = vmatpush1.msra.mxu0 %v1168
        %1175 = vmatprep.subr.mxu0 0.0
        %1176 = vmatpush1.msra.mxu0 0.0
        %1177 = vmatprep.subr.mxu0 0.0
        %1178 = vmatpush1.msra.mxu0 0.0
        %1179 = vmatprep.subr.mxu0 0.0
        %1180 = vmatpush1.msra.mxu0 0.0
        %1181 = vmatprep.subr.mxu0 0.0
        %1182 = vmatpush1.msra.mxu0 0.0
        %1183 = vmatprep.subr.mxu0 0.0
        %1184 = vmatpush1.msra.mxu0 0.0
        %1185 = vmatprep.subr.mxu0 0.0
        %1186 = vmatpush1.msra.mxu0 0.0
        %1187 = vmatprep.subr.mxu0 0.0
        %1188 = vmatpush1.msra.mxu0 0.0
        %1189 = vmatprep.subr.mxu0 0.0
        %1190 = vmatpush1.msra.mxu0 0.0
        %1191 = vmatprep.subr.mxu0 0.0
        %1192 = vmatpush1.msra.mxu0 0.0
        %1193 = vmatprep.subr.mxu0 0.0
        %1194 = vmatpush1.msra.mxu0 0.0
        %1195 = vmatprep.subr.mxu0 0.0
        %1196 = vmatpush1.msra.mxu0 0.0
        %1197 = vmatprep.subr.mxu0 0.0
        %1198 = vmatpush1.msra.mxu0 0.0
        %1199 = vmatprep.subr.mxu0 0.0
        %1200 = vmatpush1.msra.mxu0 0.0
        %1201 = vmatprep.subr.mxu0 0.0
        %1202 = vmatpush1.msra.mxu0 0.0
        %1203 = vmatprep.subr.mxu0 0.0
        %1204 = vmatpush1.msra.mxu0 0.0
        %1205 = vmatprep.subr.mxu0 0.0
        %1206 = vmatpush1.msra.mxu0 0.0
        %1207 = vmatprep.subr.mxu0 0.0
        %1208 = vmatpush1.msra.mxu0 0.0
        %1209 = vmatprep.subr.mxu0 0.0
        %1210 = vmatpush1.msra.mxu0 0.0
        %1211 = vmatprep.subr.mxu0 0.0
        %1212 = vmatpush1.msra.mxu0 0.0
        %1213 = vmatprep.subr.mxu0 0.0
        %1214 = vmatpush1.msra.mxu0 0.0
        %1215 = vmatprep.subr.mxu0 0.0
        %1216 = vmatpush1.msra.mxu0 0.0
        %1217 = vmatprep.subr.mxu0 0.0
        %1218 = vmatpush1.msra.mxu0 0.0
        %1219 = vmatprep.subr.mxu0 0.0
        %1220 = vmatpush1.msra.mxu0 0.0
        %1221 = vmatprep.subr.mxu0 0.0
        %1222 = vmatpush1.msra.mxu0 0.0
        %1223 = vmatprep.subr.mxu0 0.0
        %1224 = vmatpush1.msra.mxu0 0.0
        %1225 = vmatprep.subr.mxu0 0.0
        %1226 = vmatpush1.msra.mxu0 0.0
        %1227 = vmatprep.subr.mxu0 0.0
        %1228 = vmatpush1.msra.mxu0 0.0
        %1229 = vmatprep.subr.mxu0 0.0
        %1230 = vmatpush1.msra.mxu0 0.0
        %1231 = vmatprep.subr.mxu0 0.0
        %1232 = vmatpush1.msra.mxu0 0.0
        %1233 = vmatprep.subr.mxu0 0.0
        %1234 = vmatpush1.msra.mxu0 0.0
        %1235 = vmatprep.subr.mxu0 0.0
        %1236 = vmatpush1.msra.mxu0 0.0
        %1237 = vmatprep.mubr.f32.mxu0 0.0
        %1238 = vmatmul.mubr.f32.gmra.mrb[0].mxu0 %v1171
        %v1239 = vpop.f32.mrb[0].mxu0
        %v1240 = vadd.f32 0.0, %v1239
        %v1241 = vpop.f32.mrb[0].mxu0
        %1242 = vdwg.mxu0
        %v1243 = vld [vmem:[%s2 + $0x18] sm:$0xff]
        %v1244 = vld [vmem:[#allocation2] sm:$0xff]
        %v1246 = vsel %vm348, %v1240, 0
        %1248 = vmatprep.subr.mxu0 0.0
        %1249 = vmatpush1.msra.mxu0 %v1243
        %1250 = vmatprep.subr.mxu0 0.0
        %1251 = vmatpush1.msra.mxu0 0.0
        %1252 = vmatprep.subr.mxu0 0.0
        %1253 = vmatpush1.msra.mxu0 0.0
        %1254 = vmatprep.subr.mxu0 0.0
        %1255 = vmatpush1.msra.mxu0 0.0
        %1256 = vmatprep.subr.mxu0 0.0
        %1257 = vmatpush1.msra.mxu0 0.0
        %1258 = vmatprep.subr.mxu0 0.0
        %1259 = vmatpush1.msra.mxu0 0.0
        %1260 = vmatprep.subr.mxu0 0.0
        %1261 = vmatpush1.msra.mxu0 0.0
        %1262 = vmatprep.subr.mxu0 0.0
        %1263 = vmatpush1.msra.mxu0 0.0
        %1264 = vmatprep.subr.mxu0 0.0
        %1265 = vmatpush1.msra.mxu0 0.0
        %1266 = vmatprep.subr.mxu0 0.0
        %1267 = vmatpush1.msra.mxu0 0.0
        %1268 = vmatprep.subr.mxu0 0.0
        %1269 = vmatpush1.msra.mxu0 0.0
        %1270 = vmatprep.subr.mxu0 0.0
        %1271 = vmatpush1.msra.mxu0 0.0
        %1272 = vmatprep.subr.mxu0 0.0
        %1273 = vmatpush1.msra.mxu0 0.0
        %1274 = vmatprep.subr.mxu0 0.0
        %1275 = vmatpush1.msra.mxu0 0.0
        %1276 = vmatprep.subr.mxu0 0.0
        %1277 = vmatpush1.msra.mxu0 0.0
        %1278 = vmatprep.subr.mxu0 0.0
        %1279 = vmatpush1.msra.mxu0 0.0
        %1280 = vmatprep.subr.mxu0 0.0
        %1281 = vmatpush1.msra.mxu0 0.0
        %1282 = vmatprep.subr.mxu0 0.0
        %1283 = vmatpush1.msra.mxu0 0.0
        %1284 = vmatprep.subr.mxu0 0.0
        %1285 = vmatpush1.msra.mxu0 0.0
        %1286 = vmatprep.subr.mxu0 0.0
        %1287 = vmatpush1.msra.mxu0 0.0
        %1288 = vmatprep.subr.mxu0 0.0
        %1289 = vmatpush1.msra.mxu0 0.0
        %1290 = vmatprep.subr.mxu0 0.0
        %1291 = vmatpush1.msra.mxu0 0.0
        %1292 = vmatprep.subr.mxu0 0.0
        %1293 = vmatpush1.msra.mxu0 0.0
        %1294 = vmatprep.subr.mxu0 0.0
        %1295 = vmatpush1.msra.mxu0 0.0
        %1296 = vmatprep.subr.mxu0 0.0
        %1297 = vmatpush1.msra.mxu0 0.0
        %1298 = vmatprep.subr.mxu0 0.0
        %1299 = vmatpush1.msra.mxu0 0.0
        %1300 = vmatprep.subr.mxu0 0.0
        %1301 = vmatpush1.msra.mxu0 0.0
        %1302 = vmatprep.subr.mxu0 0.0
        %1303 = vmatpush1.msra.mxu0 0.0
        %1304 = vmatprep.subr.mxu0 0.0
        %1305 = vmatpush1.msra.mxu0 0.0
        %1306 = vmatprep.subr.mxu0 0.0
        %1307 = vmatpush1.msra.mxu0 0.0
        %1308 = vmatprep.subr.mxu0 0.0
        %1309 = vmatpush1.msra.mxu0 0.0
        %1310 = vmatprep.subr.mxu0 0.0
        %1311 = vmatpush1.msra.mxu0 0.0
        %1312 = vmatprep.mubr.f32.mxu0 0.0
        %1313 = vmatmul.mubr.f32.gmra.mrb[0].mxu0 %v1246
        %v1314 = vpop.f32.mrb[0].mxu0
        %v1315 = vadd.f32 0.0, %v1314
        %v1316 = vpop.f32.mrb[0].mxu0
        %1317 = vdwg.mxu0
        %v1318 = vadd.f32 %v1244, %v1315
        %1319 = vst.msk [vmem:[#allocation2] sm:$0xff] %vm270, %v1318
        %v1320 = vld [vmem:[#allocation2] sm:$0xff]
        %v1321 = vld [vmem:[%s4] sm:$0x1]
        %v1323 = vlaneseq
        %v1324 = vshrl.u32 %v1323, 7
        %v1325 = vsub.s32 0, %v1324
        %v1326 = vrot.slane %v1321, %v1325
        %v1328 = vadd.f32 %v1320, %v1326
        %1329 = vst.msk [vmem:[%s246] sm:$0xff] %vm270, %v1328
        %s1330 = sand.u32 %s142, 1
        %s1331 = scalar_lea.sflag [#allocation4], %s1330
        %s1332 = sand.u32 %s142, 1
        %s1333 = smul.addr %s1332, 8
        %s1334 = scalar_lea.vmem [#allocation3], %s1333
        %s1335 = sand.u32 %s168, 1
        %s1336 = scalar_lea.sflag [#allocation6], %s1335
        %s1337 = sand.u32 %s168, 1
        %s1338 = smul.addr %s1337, 32
        %s1339 = scalar_lea.vmem [#allocation5], %s1338
        // Predicated region
        $region41: #{attention_forward.1} parent=39 // pred_check
          %p1340 = pneg %p152
        $region42: #{attention_forward.1} parent=39 // pred_check_branch
          %1342 = sbr.rel (%p1340) target = $region44
        $region43: #{attention_forward.1} parent=39 // pred_region
          %s1344 = ssub.s32 128, 128
          %1345 = vsyncadd %s1331, %s1344
          %s1346 = smul.addr %s24, 128
          %s1347 = scalar_lea.hbm %s5, %s1346
          %s1349 = sshll.u32 %s1334, 4
          %s1350 = int_to_ptr.vmem [resolvable:$true] %s1349
          %1352 = dma.vmem_to_hbm [thread:$0]  %s1350, 128, %s1347, %s1331
        $region44: #{attention_forward.1} parent=39 // pred_fallthru
          _
        // Predicated region
        $region45: #{attention_forward.1} parent=39 // pred_check
          %p1353 = pneg %p178
        $region46: #{attention_forward.1} parent=39 // pred_check_branch
          %1355 = sbr.rel (%p1353) target = $region48
        $region47: #{attention_forward.1} parent=39 // pred_region
          %s1357 = ssub.s32 512, 512
          %1358 = vsyncadd %s1336, %s1357
          %s1359 = smul.addr %s24, 4
          %s1360 = smul.addr %s1359, 128
          %s1361 = scalar_lea.hbm %s6, %s1360
          %s1362 = sshll.u32 %s1339, 4
          %s1363 = int_to_ptr.vmem [resolvable:$true] %s1362
          %1368 = dma.vmem_to_hbm [thread:$0]  %s1363, 512, %s1361, %s1336, 128, 128, 8
        $region48: #{attention_forward.1} parent=39 // pred_fallthru
          _
      $region40: #{attention_forward.1} parent=5 // pred_fallthru
        _
      %p1369 = scmp.le.s32.totalorder 2, %s19
      // Predicated region
      $region49: #{attention_forward.1} parent=5 // pred_check
        %p1370 = pneg %p1369
      $region50: #{attention_forward.1} parent=5 // pred_check_branch
        %1372 = sbr.rel (%p1370) target = $region52
      $region51: #{attention_forward.1} parent=5 // pred_region
        %s1373 = ssub.s32 %s19, 2
        // Predicated region
        $region53: #{attention_forward.1} parent=51 // pred_check
          %p1374 = pneg %p158
        $region54: #{attention_forward.1} parent=51 // pred_check_branch
          %1376 = sbr.rel (%p1374) target = $region56
        $region55: #{attention_forward.1} parent=51 // pred_region
          %s1377 = sand.u32 %s143, 1
          %s1378 = scalar_lea.sflag [#allocation4], %s1377
          %s1379 = sand.u32 %s143, 1
          %s1380 = smul.addr %s1379, 8
          %s1381 = scalar_lea.vmem [#allocation3], %s1380
          %1382 = dma.done %s1378, 128
        $region56: #{attention_forward.1} parent=51 // pred_fallthru
          _
        // Predicated region
        $region57: #{attention_forward.1} parent=51 // pred_check
          %p1383 = pneg %p184
        $region58: #{attention_forward.1} parent=51 // pred_check_branch
          %1385 = sbr.rel (%p1383) target = $region60
        $region59: #{attention_forward.1} parent=51 // pred_region
          %s1386 = sand.u32 %s169, 1
          %s1387 = scalar_lea.sflag [#allocation6], %s1386
          %s1388 = sand.u32 %s169, 1
          %s1389 = smul.addr %s1388, 32
          %s1390 = scalar_lea.vmem [#allocation5], %s1389
          %1391 = dma.done %s1387, 512
        $region60: #{attention_forward.1} parent=51 // pred_fallthru
          _
      $region52: #{attention_forward.1} parent=5 // pred_fallthru
        _
    $region6: #{attention_forward.1} parent=1 // loop_footer
      %s23 = sadd.s32 1, %s19
    $region7: #{attention_forward.1} parent=1 // loop_footer_branch
      %18 = sbr.rel target = $region3
    $region8: #{attention_forward.1} parent=1 // loop_exit
      _
    %1392 = vsyncpa [#allocation4], 1
    %s1393 = scalar_lea.sflag [#allocation4], 1
    %1394 = vsyncpa %s1393, 1
    %1395 = vsyncpa [#allocation6], 1
    %s1396 = scalar_lea.sflag [#allocation6], 1
    %1397 = vsyncpa %s1396, 1

</llo_original>
